<compile_context>
chip_gen: v7x
topology: tpu7x:2x2x1
jax: 0.10.0
libtpu: 0.0.40
codegen_flags: <defaults>
</compile_context>

<pallas_src>
import functools

import jax
import jax.numpy as jnp
from jax.experimental import pallas as pl
from jax.experimental.pallas import tpu as pltpu


def _round_up(x, m):
    return (x + m - 1) // m * m


def gesture_net_kernel(x_ref, w1_ref, b1_ref, w2_ref, b2_ref, w3_ref, b3_ref,
                       o_ref):
    # Cast the f32 activation tile to bf16 in-kernel (no wrapper pad/cast pass).
    x = x_ref[...].astype(jnp.bfloat16)
    # fc1 + ReLU   (dropout == identity in eval mode)
    h1 = jnp.dot(x, w1_ref[...], preferred_element_type=jnp.float32)
    h1 = jnp.maximum(h1 + b1_ref[...], 0.0).astype(jnp.bfloat16)
    # fc2 + ReLU
    h2 = jnp.dot(h1, w2_ref[...], preferred_element_type=jnp.float32)
    h2 = jnp.maximum(h2 + b2_ref[...], 0.0).astype(jnp.bfloat16)
    # fc3 + ReLU  (output lanes padded to 128; padded w3/b3 cols are zero)
    h3 = jnp.dot(h2, w3_ref[...], preferred_element_type=jnp.float32)
    h3 = jnp.maximum(h3 + b3_ref[...], 0.0)
    o_ref[...] = h3.astype(o_ref.dtype)


def prepare_params(params):
    """One-time bf16 cast + class-dim padding of the weights/biases.

    Returns (prepared_dict, num_classes).  Call once and reuse across
    forward calls so no per-call weight re-pad / re-cast work remains.
    """
    w1 = params["w1"].astype(jnp.bfloat16)            # (D, 256)
    w2 = params["w2"].astype(jnp.bfloat16)            # (256, 128)
    H2, C = params["w3"].shape
    C_pad = _round_up(C, 128)
    w3 = jnp.zeros((H2, C_pad), jnp.bfloat16).at[:, :C].set(
        params["w3"].astype(jnp.bfloat16))
    b1 = params["b1"].astype(jnp.float32).reshape(1, -1)
    b2 = params["b2"].astype(jnp.float32).reshape(1, -1)
    b3 = jnp.zeros((1, C_pad), jnp.float32).at[:, :C].set(
        params["b3"].astype(jnp.float32).reshape(1, -1))
    prepared = {"w1": w1, "b1": b1, "w2": w2, "b2": b2, "w3": w3, "b3": b3}
    return prepared, C


@functools.partial(jax.jit, static_argnames=("num_classes", "tile_b"))
def gesture_net_forward(x, prepared, *, num_classes=7, tile_b=512):
    """x: (B, D) float32.  prepared: output of prepare_params."""
    B, D = x.shape
    w1, b1 = prepared["w1"], prepared["b1"]
    w2, b2 = prepared["w2"], prepared["b2"]
    w3, b3 = prepared["w3"], prepared["b3"]
    H1, H2, C_pad = w1.shape[1], w2.shape[1], w3.shape[1]

    # Batch tile: multiple of 16 sublanes (bf16-friendly), capped by batch.
    # Default 512 -> for B=1024 a 2-step "parallel" grid (one per v7x TC).
    tile_b = max(16, min(int(tile_b), _round_up(B, 16)))
    tile_b = _round_up(tile_b, 16)
    B_pad = _round_up(B, tile_b)

    # Only pad the batch dim if needed (no feature-dim pad, no cast pass).
    xp = x if B_pad == B else jnp.pad(x, ((0, B_pad - B), (0, 0)))

    grid = (B_pad // tile_b,)

    flops = 2 * B_pad * (D * H1 + H1 * H2 + H2 * C_pad)
    bytes_accessed = (
        xp.size * 4                                     # f32 x in
        + (w1.size + w2.size + w3.size) * 2             # bf16 weights
        + (b1.size + b2.size + b3.size) * 4             # f32 biases
        + B_pad * C_pad * 2)                            # bf16 out

    # Whole-array, single-buffered, VMEM-resident specs for the invariant
    # weights / biases (no per-grid-step re-blocking or double buffering).
    vmem_spec = pl.BlockSpec(memory_space=pltpu.MemorySpace.VMEM)

    out = pl.pallas_call(
        gesture_net_kernel,
        out_shape=jax.ShapeDtypeStruct((B_pad, C_pad), jnp.bfloat16),
        grid=grid,
        in_specs=[
            # D equals the full array dim, so (tile_b, D) satisfies the
            # (8,128) rule even when D is not a multiple of 128.
            pl.BlockSpec((tile_b, D), lambda i: (i, 0)),   # x tile (f32)
            vmem_spec,                                      # w1
            vmem_spec,                                      # b1
            vmem_spec,                                      # w2
            vmem_spec,                                      # b2
            vmem_spec,                                      # w3
            vmem_spec,                                      # b3
        ],
        out_specs=pl.BlockSpec((tile_b, C_pad), lambda i: (i, 0)),
        compiler_params=pltpu.CompilerParams(
            dimension_semantics=("parallel",),
            vmem_limit_bytes=32 * 1024 * 1024),
        cost_estimate=pl.CostEstimate(
            flops=flops, transcendentals=0, bytes_accessed=bytes_accessed),
    )(xp, w1, b1, w2, b2, w3, b3)

    return out[:B, :num_classes].astype(jnp.float32)


def init_params(key, in_dim, h1=256, h2=128, out_dim=7):
    """PyTorch-style uniform(-1/sqrt(fan_in), 1/sqrt(fan_in)); (in,out) layout."""
    ks = jax.random.split(key, 6)

    def lin(kw, kb, fan_in, fan_out):
        bound = 1.0 / jnp.sqrt(jnp.float32(fan_in))
        w = jax.random.uniform(kw, (fan_in, fan_out), jnp.float32,
                               -bound, bound)
        b = jax.random.uniform(kb, (1, fan_out), jnp.float32, -bound, bound)
        return w, b

    w1, b1 = lin(ks[0], ks[1], in_dim, h1)
    w2, b2 = lin(ks[2], ks[3], h1, h2)
    w3, b3 = lin(ks[4], ks[5], h2, out_dim)
    return {"w1": w1, "b1": b1, "w2": w2, "b2": b2, "w3": w3, "b3": b3}


if __name__ == "__main__":
    key = jax.random.PRNGKey(0)
    k_x, k_p = jax.random.split(key)

    # B=1024 with tile_b=512 -> 2 "parallel" grid steps (one per v7x TC);
    # D=64 mirrors a typical X_train feature width (no 128-pad needed now).
    B, D = 1024, 64
    x = jax.random.normal(k_x, (B, D), jnp.float32)
    params = init_params(k_p, D)

    prepared, num_classes = prepare_params(params)   # one-time weight prep
    out = gesture_net_forward(x, prepared, num_classes=num_classes, tile_b=512)
    out = jax.block_until_ready(out)

    # Reference in plain JAX with the same bf16 quantization points as the
    # kernel (bf16 inputs/weights, f32 accumulation, bf16 output store,
    # eval-mode dropout = identity).
    def ref(x, p):
        def q(a):
            return a.astype(jnp.bfloat16).astype(jnp.float32)
        h = jnp.maximum(q(x) @ q(p["w1"]) + p["b1"], 0.0)
        h = jnp.maximum(q(h) @ q(p["w2"]) + p["b2"], 0.0)
        h = jnp.maximum(q(h) @ q(p["w3"]) + p["b3"], 0.0)
        return q(h)

    expected = ref(x, params)
    assert out.shape == (B, 7)
    assert jnp.allclose(out, expected, atol=2e-2, rtol=2e-2), float(
        jnp.max(jnp.abs(out - expected)))

    print("KERNEL_OK")
</pallas_src>

<mosaic_0001>
module attributes {stable_mosaic.version = 11 : i64} {
  func.func @gesture_net_kernel(%arg0: i32, %arg1: memref<512x64xf32, #tpu.memory_space<vmem>>, %arg2: memref<64x256xbf16, #tpu.memory_space<vmem>>, %arg3: memref<1x256xf32, #tpu.memory_space<vmem>>, %arg4: memref<256x128xbf16, #tpu.memory_space<vmem>>, %arg5: memref<1x128xf32, #tpu.memory_space<vmem>>, %arg6: memref<128x128xbf16, #tpu.memory_space<vmem>>, %arg7: memref<1x128xf32, #tpu.memory_space<vmem>>, %arg8: memref<512x128xbf16, #tpu.memory_space<vmem>>) attributes {dimension_semantics = [#tpu.dimension_semantics<parallel>], iteration_bounds = array<i64: 2>, scalar_prefetch = 0 : i64, scratch_operands = 0 : i64, tpu.core_type = #tpu.core_type<tc>, window_params = [{transform_indices = @transform_0, window_bounds = array<i64: 512, 64>}, {pipeline_mode = #tpu.pipeline_mode<synchronous>, transform_indices = @transform_1, window_bounds = array<i64: 64, 256>}, {pipeline_mode = #tpu.pipeline_mode<synchronous>, transform_indices = @transform_2, window_bounds = array<i64: 1, 256>}, {pipeline_mode = #tpu.pipeline_mode<synchronous>, transform_indices = @transform_3, window_bounds = array<i64: 256, 128>}, {pipeline_mode = #tpu.pipeline_mode<synchronous>, transform_indices = @transform_4, window_bounds = array<i64: 1, 128>}, {pipeline_mode = #tpu.pipeline_mode<synchronous>, transform_indices = @transform_5, window_bounds = array<i64: 128, 128>}, {pipeline_mode = #tpu.pipeline_mode<synchronous>, transform_indices = @transform_6, window_bounds = array<i64: 1, 128>}, {transform_indices = @transform_7, window_bounds = array<i64: 512, 128>}]} {
    %c0 = arith.constant 0 : index
    %c0_0 = arith.constant 0 : index
    %0 = vector.load %arg1[%c0, %c0_0] : memref<512x64xf32, #tpu.memory_space<vmem>>, vector<512x64xf32>
    %1 = arith.truncf %0 : vector<512x64xf32> to vector<512x64xbf16>
    %c0_1 = arith.constant 0 : index
    %c0_2 = arith.constant 0 : index
    %2 = vector.load %arg2[%c0_1, %c0_2] : memref<64x256xbf16, #tpu.memory_space<vmem>>, vector<64x256xbf16>
    %cst = arith.constant dense<0.000000e+00> : vector<512x256xf32>
    %3 = tpu.matmul %1, %2, %cst {dimension_numbers = #tpu.dot_dimension_numbers<[1], [0], [0], [1], [0, 0, 1, 1], [], []>} : vector<512x64xbf16>, vector<64x256xbf16>, vector<512x256xf32> -> vector<512x256xf32>
    %c0_3 = arith.constant 0 : index
    %c0_4 = arith.constant 0 : index
    %4 = vector.load %arg3[%c0_3, %c0_4] : memref<1x256xf32, #tpu.memory_space<vmem>>, vector<1x256xf32>
    %5 = vector.broadcast %4 : vector<1x256xf32> to vector<512x256xf32>
    %6 = arith.addf %3, %5 : vector<512x256xf32>
    %cst_5 = arith.constant 0.000000e+00 : f32
    %7 = vector.broadcast %cst_5 : f32 to vector<512x256xf32>
    %8 = arith.maximumf %6, %7 : vector<512x256xf32>
    %9 = arith.truncf %8 : vector<512x256xf32> to vector<512x256xbf16>
    %c0_6 = arith.constant 0 : index
    %c0_7 = arith.constant 0 : index
    %10 = vector.load %arg4[%c0_6, %c0_7] : memref<256x128xbf16, #tpu.memory_space<vmem>>, vector<256x128xbf16>
    %cst_8 = arith.constant dense<0.000000e+00> : vector<512x128xf32>
    %11 = tpu.matmul %9, %10, %cst_8 {dimension_numbers = #tpu.dot_dimension_numbers<[1], [0], [0], [1], [0, 0, 1, 1], [], []>} : vector<512x256xbf16>, vector<256x128xbf16>, vector<512x128xf32> -> vector<512x128xf32>
    %c0_9 = arith.constant 0 : index
    %c0_10 = arith.constant 0 : index
    %12 = vector.load %arg5[%c0_9, %c0_10] : memref<1x128xf32, #tpu.memory_space<vmem>>, vector<1x128xf32>
    %13 = vector.broadcast %12 : vector<1x128xf32> to vector<512x128xf32>
    %14 = arith.addf %11, %13 : vector<512x128xf32>
    %cst_11 = arith.constant 0.000000e+00 : f32
    %15 = vector.broadcast %cst_11 : f32 to vector<512x128xf32>
    %16 = arith.maximumf %14, %15 : vector<512x128xf32>
    %17 = arith.truncf %16 : vector<512x128xf32> to vector<512x128xbf16>
    %c0_12 = arith.constant 0 : index
    %c0_13 = arith.constant 0 : index
    %18 = vector.load %arg6[%c0_12, %c0_13] : memref<128x128xbf16, #tpu.memory_space<vmem>>, vector<128x128xbf16>
    %cst_14 = arith.constant dense<0.000000e+00> : vector<512x128xf32>
    %19 = tpu.matmul %17, %18, %cst_14 {dimension_numbers = #tpu.dot_dimension_numbers<[1], [0], [0], [1], [0, 0, 1, 1], [], []>} : vector<512x128xbf16>, vector<128x128xbf16>, vector<512x128xf32> -> vector<512x128xf32>
    %c0_15 = arith.constant 0 : index
    %c0_16 = arith.constant 0 : index
    %20 = vector.load %arg7[%c0_15, %c0_16] : memref<1x128xf32, #tpu.memory_space<vmem>>, vector<1x128xf32>
    %21 = vector.broadcast %20 : vector<1x128xf32> to vector<512x128xf32>
    %22 = arith.addf %19, %21 : vector<512x128xf32>
    %cst_17 = arith.constant 0.000000e+00 : f32
    %23 = vector.broadcast %cst_17 : f32 to vector<512x128xf32>
    %24 = arith.maximumf %22, %23 : vector<512x128xf32>
    %25 = arith.truncf %24 : vector<512x128xf32> to vector<512x128xbf16>
    %c0_18 = arith.constant 0 : index
    %c0_19 = arith.constant 0 : index
    %26 = vector.load %arg8[%c0_18, %c0_19] : memref<512x128xbf16, #tpu.memory_space<vmem>>, vector<512x128xbf16>
    tpu.vector_store %arg8[%c0_18, %c0_19], %25 {strides = array<i32>} : memref<512x128xbf16, #tpu.memory_space<vmem>>, vector<512x128xbf16>,
    return
  }
  func.func @transform_0(%arg0: i32) -> (i32, i32) {
    %c0_i32 = arith.constant 0 : i32
    %c0_i32_0 = arith.constant 0 : i32
    return %arg0, %c0_i32 : i32, i32
  }
  func.func @transform_1(%arg0: i32) -> (i32, i32) {
    %c0_i32 = arith.constant 0 : i32
    %c0_i32_0 = arith.constant 0 : i32
    %c0_i32_1 = arith.constant 0 : i32
    return %c0_i32, %c0_i32_0 : i32, i32
  }
  func.func @transform_2(%arg0: i32) -> (i32, i32) {
    %c0_i32 = arith.constant 0 : i32
    %c0_i32_0 = arith.constant 0 : i32
    %c0_i32_1 = arith.constant 0 : i32
    return %c0_i32, %c0_i32_0 : i32, i32
  }
  func.func @transform_3(%arg0: i32) -> (i32, i32) {
    %c0_i32 = arith.constant 0 : i32
    %c0_i32_0 = arith.constant 0 : i32
    %c0_i32_1 = arith.constant 0 : i32
    return %c0_i32, %c0_i32_0 : i32, i32
  }
  func.func @transform_4(%arg0: i32) -> (i32, i32) {
    %c0_i32 = arith.constant 0 : i32
    %c0_i32_0 = arith.constant 0 : i32
    %c0_i32_1 = arith.constant 0 : i32
    return %c0_i32, %c0_i32_0 : i32, i32
  }
  func.func @transform_5(%arg0: i32) -> (i32, i32) {
    %c0_i32 = arith.constant 0 : i32
    %c0_i32_0 = arith.constant 0 : i32
    %c0_i32_1 = arith.constant 0 : i32
    return %c0_i32, %c0_i32_0 : i32, i32
  }
  func.func @transform_6(%arg0: i32) -> (i32, i32) {
    %c0_i32 = arith.constant 0 : i32
    %c0_i32_0 = arith.constant 0 : i32
    %c0_i32_1 = arith.constant 0 : i32
    return %c0_i32, %c0_i32_0 : i32, i32
  }
  func.func @transform_7(%arg0: i32) -> (i32, i32) {
    %c0_i32 = arith.constant 0 : i32
    %c0_i32_0 = arith.constant 0 : i32
    return %arg0, %c0_i32 : i32, i32
  }
}

</mosaic_0001>

<llo_original>
// kernel: gesture_net_forward.1
$region0: #{gesture_net_forward.1}
  #allocation0 [shape = 'u32[]', space=smem, size = 0x4, offset = 0x4, fixed_abs, tag = 'smem constant byte address 0x4 - core index']
  #allocation1 [shape = 'u32[144,128]{1,0:T(1,128)}', space=vmem, size = 0x12000, scoped, tag = 'internal scratch']
  %s0 = inlined_call_operand.vmem [shape: f32[1024,64], index: 0, kind: input, shape index: {}]
  %s1 = inlined_call_operand.vmem [shape: bf16[64,256], index: 1, kind: input, shape index: {}]
  %s2 = inlined_call_operand.vmem [shape: f32[1,256], index: 2, kind: input, shape index: {}]
  %s3 = inlined_call_operand.vmem [shape: bf16[256,128], index: 3, kind: input, shape index: {}]
  %s4 = inlined_call_operand.vmem [shape: f32[1,128], index: 4, kind: input, shape index: {}]
  %s5 = inlined_call_operand.vmem [shape: bf16[128,128], index: 5, kind: input, shape index: {}]
  %s6 = inlined_call_operand.vmem [shape: f32[1,128], index: 6, kind: input, shape index: {}]
  %s7 = inlined_call_operand.vmem [shape: bf16[1024,128], index: 7, kind: output, shape index: {}]
  %s8 = sld [smem:[#allocation0]]
  $region61: #{gesture_net_forward.1} parent=0
    _
  %s10 = ssub.s32 1, %s8
  %s11 = scalar_select 0, %s10, %s8
  loop: start=0, step=1, limit=4
  $region2: #{gesture_net_forward.1} parent=0 // loop_pre_header
    _
  $region3: #{gesture_net_forward.1} parent=0 // loop_header
    %s13 = sphi 0, %s17
    %p14 = scmp.ge.s32.totalorder %s13, 4
    %s23 = sphi 0, %s25
    %s26 = sphi 0, %s23
    %s27 = sphi 0, %s26
    %s43 = sphi 0, %s27
    %s47 = sphi 0, %s47
    %s49 = sphi 0, %s47
    %s50 = sphi 0, %s49
    %s64 = sphi 0, %s50
    %s68 = sphi 0, %s68
    %s70 = sphi 0, %s68
    %s71 = sphi 0, %s70
    %s85 = sphi 0, %s71
    %s89 = sphi 0, %s89
    %s91 = sphi 0, %s89
    %s92 = sphi 0, %s91
    %s106 = sphi 0, %s92
    %s110 = sphi 0, %s110
    %s112 = sphi 0, %s110
    %s113 = sphi 0, %s112
    %s127 = sphi 0, %s113
    %s131 = sphi 0, %s131
    %s133 = sphi 0, %s131
    %s134 = sphi 0, %s133
    %s148 = sphi 0, %s134
    %s152 = sphi 0, %s152
    %s154 = sphi 0, %s152
    %s155 = sphi 0, %s154
    %s169 = sphi 0, %s155
    %s175 = sphi 0, %s177
    %s178 = sphi 0, %s175
    %s179 = sphi 0, %s178
    %s195 = sphi 0, %s179
  $region4: #{gesture_net_forward.1} parent=0 // loop_header_branch
    %16 = sbr.rel (%p14) target = $region8
  $region5: #{gesture_net_forward.1} parent=0 // loop_body
    %s18 = ssub.s32 %s13, 1
    %s19 = ssub.s32 %s13, 2
    %s20 = sadd.s32 %s13, 1
    %s21 = ssub.s32 %s13, %s20
    %p22 = scmp.eq.s32.totalorder %s21, 0
    %s24 = sadd.s32 %s23, 1
    %s25 = scalar_select %p22, %s23, %s24
    %p28 = pneg %p22
    %p29 = scmp.eq.s32.totalorder %s13, 1
    %p30 = por %p28, %p29
    %p31 = scmp.ne.s32.totalorder %s23, %s26
    %p32 = scmp.eq.s32.totalorder %s13, 0
    %p33 = por %p31, %p32
    %p34 = scmp.ne.s32.totalorder %s23, %s26
    %p35 = scmp.eq.s32.totalorder %s18, 1
    %p36 = por %p34, %p35
    %p37 = scmp.ne.s32.totalorder %s26, %s27
    %p38 = scmp.eq.s32.totalorder %s18, 0
    %p39 = por %p37, %p38
    %p40 = scmp.ne.s32.totalorder %s26, %s27
    %p41 = scmp.eq.s32.totalorder %s19, 1
    %p42 = por %p40, %p41
    %p44 = scmp.ne.s32.totalorder %s27, %s43
    %p45 = scmp.eq.s32.totalorder %s19, 0
    %p46 = por %p44, %p45
    %s48 = sadd.s32 %s47, 1
    %p51 = scmp.eq.s32.totalorder %s13, 1
    %p52 = scmp.ne.s32.totalorder %s47, %s49
    %p53 = scmp.eq.s32.totalorder %s13, 0
    %p54 = por %p52, %p53
    %p55 = scmp.ne.s32.totalorder %s47, %s49
    %p56 = scmp.eq.s32.totalorder %s18, 1
    %p57 = por %p55, %p56
    %p58 = scmp.ne.s32.totalorder %s49, %s50
    %p59 = scmp.eq.s32.totalorder %s18, 0
    %p60 = por %p58, %p59
    %p61 = scmp.ne.s32.totalorder %s49, %s50
    %p62 = scmp.eq.s32.totalorder %s19, 1
    %p63 = por %p61, %p62
    %p65 = scmp.ne.s32.totalorder %s50, %s64
    %p66 = scmp.eq.s32.totalorder %s19, 0
    %p67 = por %p65, %p66
    %s69 = sadd.s32 %s68, 1
    %p72 = scmp.eq.s32.totalorder %s13, 1
    %p73 = scmp.ne.s32.totalorder %s68, %s70
    %p74 = scmp.eq.s32.totalorder %s13, 0
    %p75 = por %p73, %p74
    %p76 = scmp.ne.s32.totalorder %s68, %s70
    %p77 = scmp.eq.s32.totalorder %s18, 1
    %p78 = por %p76, %p77
    %p79 = scmp.ne.s32.totalorder %s70, %s71
    %p80 = scmp.eq.s32.totalorder %s18, 0
    %p81 = por %p79, %p80
    %p82 = scmp.ne.s32.totalorder %s70, %s71
    %p83 = scmp.eq.s32.totalorder %s19, 1
    %p84 = por %p82, %p83
    %p86 = scmp.ne.s32.totalorder %s71, %s85
    %p87 = scmp.eq.s32.totalorder %s19, 0
    %p88 = por %p86, %p87
    %s90 = sadd.s32 %s89, 1
    %p93 = scmp.eq.s32.totalorder %s13, 1
    %p94 = scmp.ne.s32.totalorder %s89, %s91
    %p95 = scmp.eq.s32.totalorder %s13, 0
    %p96 = por %p94, %p95
    %p97 = scmp.ne.s32.totalorder %s89, %s91
    %p98 = scmp.eq.s32.totalorder %s18, 1
    %p99 = por %p97, %p98
    %p100 = scmp.ne.s32.totalorder %s91, %s92
    %p101 = scmp.eq.s32.totalorder %s18, 0
    %p102 = por %p100, %p101
    %p103 = scmp.ne.s32.totalorder %s91, %s92
    %p104 = scmp.eq.s32.totalorder %s19, 1
    %p105 = por %p103, %p104
    %p107 = scmp.ne.s32.totalorder %s92, %s106
    %p108 = scmp.eq.s32.totalorder %s19, 0
    %p109 = por %p107, %p108
    %s111 = sadd.s32 %s110, 1
    %p114 = scmp.eq.s32.totalorder %s13, 1
    %p115 = scmp.ne.s32.totalorder %s110, %s112
    %p116 = scmp.eq.s32.totalorder %s13, 0
    %p117 = por %p115, %p116
    %p118 = scmp.ne.s32.totalorder %s110, %s112
    %p119 = scmp.eq.s32.totalorder %s18, 1
    %p120 = por %p118, %p119
    %p121 = scmp.ne.s32.totalorder %s112, %s113
    %p122 = scmp.eq.s32.totalorder %s18, 0
    %p123 = por %p121, %p122
    %p124 = scmp.ne.s32.totalorder %s112, %s113
    %p125 = scmp.eq.s32.totalorder %s19, 1
    %p126 = por %p124, %p125
    %p128 = scmp.ne.s32.totalorder %s113, %s127
    %p129 = scmp.eq.s32.totalorder %s19, 0
    %p130 = por %p128, %p129
    %s132 = sadd.s32 %s131, 1
    %p135 = scmp.eq.s32.totalorder %s13, 1
    %p136 = scmp.ne.s32.totalorder %s131, %s133
    %p137 = scmp.eq.s32.totalorder %s13, 0
    %p138 = por %p136, %p137
    %p139 = scmp.ne.s32.totalorder %s131, %s133
    %p140 = scmp.eq.s32.totalorder %s18, 1
    %p141 = por %p139, %p140
    %p142 = scmp.ne.s32.totalorder %s133, %s134
    %p143 = scmp.eq.s32.totalorder %s18, 0
    %p144 = por %p142, %p143
    %p145 = scmp.ne.s32.totalorder %s133, %s134
    %p146 = scmp.eq.s32.totalorder %s19, 1
    %p147 = por %p145, %p146
    %p149 = scmp.ne.s32.totalorder %s134, %s148
    %p150 = scmp.eq.s32.totalorder %s19, 0
    %p151 = por %p149, %p150
    %s153 = sadd.s32 %s152, 1
    %p156 = scmp.eq.s32.totalorder %s13, 1
    %p157 = scmp.ne.s32.totalorder %s152, %s154
    %p158 = scmp.eq.s32.totalorder %s13, 0
    %p159 = por %p157, %p158
    %p160 = scmp.ne.s32.totalorder %s152, %s154
    %p161 = scmp.eq.s32.totalorder %s18, 1
    %p162 = por %p160, %p161
    %p163 = scmp.ne.s32.totalorder %s154, %s155
    %p164 = scmp.eq.s32.totalorder %s18, 0
    %p165 = por %p163, %p164
    %p166 = scmp.ne.s32.totalorder %s154, %s155
    %p167 = scmp.eq.s32.totalorder %s19, 1
    %p168 = por %p166, %p167
    %p170 = scmp.ne.s32.totalorder %s155, %s169
    %p171 = scmp.eq.s32.totalorder %s19, 0
    %p172 = por %p170, %p171
    %s173 = ssub.s32 %s13, %s20
    %p174 = scmp.eq.s32.totalorder %s173, 0
    %s176 = sadd.s32 %s175, 1
    %s177 = scalar_select %p174, %s175, %s176
    %p180 = pneg %p174
    %p181 = scmp.eq.s32.totalorder %s13, 1
    %p182 = por %p180, %p181
    %p183 = scmp.ne.s32.totalorder %s175, %s178
    %p184 = scmp.eq.s32.totalorder %s13, 0
    %p185 = por %p183, %p184
    %p186 = scmp.ne.s32.totalorder %s175, %s178
    %p187 = scmp.eq.s32.totalorder %s18, 1
    %p188 = por %p186, %p187
    %p189 = scmp.ne.s32.totalorder %s178, %s179
    %p190 = scmp.eq.s32.totalorder %s18, 0
    %p191 = por %p189, %p190
    %p192 = scmp.ne.s32.totalorder %s178, %s179
    %p193 = scmp.eq.s32.totalorder %s19, 1
    %p194 = por %p192, %p193
    %p196 = scmp.ne.s32.totalorder %s179, %s195
    %p197 = scmp.eq.s32.totalorder %s19, 0
    %p198 = por %p196, %p197
    %p199 = scmp.le.s32.totalorder 1, %s13
    %p200 = scmp.lt.s32.totalorder %s13, 3
    %p201 = pnand %p199, %p200
    %p202 = pneg %p201
    // Predicated region
    $region9: #{gesture_net_forward.1} parent=5 // pred_check
      _
    $region10: #{gesture_net_forward.1} parent=5 // pred_check_branch
      %204 = sbr.rel (%p201) target = $region12
    $region11: #{gesture_net_forward.1} parent=5 // pred_region
      %s205 = ssub.s32 %s13, 1
      // Predicated region
      $region13: #{gesture_net_forward.1} parent=11 // pred_check
        %p206 = pneg %p60
      $region14: #{gesture_net_forward.1} parent=11 // pred_check_branch
        %208 = sbr.rel (%p206) target = $region16
      $region15: #{gesture_net_forward.1} parent=11 // pred_region
        _
      $region16: #{gesture_net_forward.1} parent=11 // pred_fallthru
        _
      // Predicated region
      $region17: #{gesture_net_forward.1} parent=11 // pred_check
        %p209 = pneg %p81
      $region18: #{gesture_net_forward.1} parent=11 // pred_check_branch
        %211 = sbr.rel (%p209) target = $region20
      $region19: #{gesture_net_forward.1} parent=11 // pred_region
        _
      $region20: #{gesture_net_forward.1} parent=11 // pred_fallthru
        _
      // Predicated region
      $region21: #{gesture_net_forward.1} parent=11 // pred_check
        %p212 = pneg %p102
      $region22: #{gesture_net_forward.1} parent=11 // pred_check_branch
        %214 = sbr.rel (%p212) target = $region24
      $region23: #{gesture_net_forward.1} parent=11 // pred_region
        _
      $region24: #{gesture_net_forward.1} parent=11 // pred_fallthru
        _
      // Predicated region
      $region25: #{gesture_net_forward.1} parent=11 // pred_check
        %p215 = pneg %p123
      $region26: #{gesture_net_forward.1} parent=11 // pred_check_branch
        %217 = sbr.rel (%p215) target = $region28
      $region27: #{gesture_net_forward.1} parent=11 // pred_region
        _
      $region28: #{gesture_net_forward.1} parent=11 // pred_fallthru
        _
      // Predicated region
      $region29: #{gesture_net_forward.1} parent=11 // pred_check
        %p218 = pneg %p144
      $region30: #{gesture_net_forward.1} parent=11 // pred_check_branch
        %220 = sbr.rel (%p218) target = $region32
      $region31: #{gesture_net_forward.1} parent=11 // pred_region
        _
      $region32: #{gesture_net_forward.1} parent=11 // pred_fallthru
        _
      // Predicated region
      $region33: #{gesture_net_forward.1} parent=11 // pred_check
        %p221 = pneg %p165
      $region34: #{gesture_net_forward.1} parent=11 // pred_check_branch
        %223 = sbr.rel (%p221) target = $region36
      $region35: #{gesture_net_forward.1} parent=11 // pred_region
        _
      $region36: #{gesture_net_forward.1} parent=11 // pred_fallthru
        _
    $region12: #{gesture_net_forward.1} parent=5 // pred_fallthru
      _
    %p224 = scmp.lt.s32.totalorder %s13, 2
    // Predicated region
    $region37: #{gesture_net_forward.1} parent=5 // pred_check
      %p225 = pneg %p224
    $region38: #{gesture_net_forward.1} parent=5 // pred_check_branch
      %227 = sbr.rel (%p225) target = $region40
    $region39: #{gesture_net_forward.1} parent=5 // pred_region
      // Predicated region
      $region41: #{gesture_net_forward.1} parent=39 // pred_check
        %p228 = pneg %p33
      $region42: #{gesture_net_forward.1} parent=39 // pred_check_branch
        %230 = sbr.rel (%p228) target = $region44
      $region43: #{gesture_net_forward.1} parent=39 // pred_region
        %s231 = smul.u32 64, %s13
        %p232 = scmp.lt.s32.totalorder %s231, 127
        %s233 = scalar_select %p232, %s231, 127
        %s234 = smul.addr %s233, 8
        %s235 = scalar_lea.vmem %s0, %s234
        %s236 = smul.u32 64, %s13
      $region44: #{gesture_net_forward.1} parent=39 // pred_fallthru
        _
    $region40: #{gesture_net_forward.1} parent=5 // pred_fallthru
      _
    %p237 = scmp.le.s32.totalorder 1, %s13
    %p238 = scmp.lt.s32.totalorder %s13, 3
    %p239 = pnand %p237, %p238
    %p240 = pneg %p239
    // Predicated region
    $region45: #{gesture_net_forward.1} parent=5 // pred_check
      _
    $region46: #{gesture_net_forward.1} parent=5 // pred_check_branch
      %242 = sbr.rel (%p239) target = $region48
    $region47: #{gesture_net_forward.1} parent=5 // pred_region
      %s243 = ssub.s32 %s13, 1
      %s244 = smul.u32 64, %s18
      %p245 = scmp.lt.s32.totalorder %s244, 127
      %s246 = scalar_select %p245, %s244, 127
      %s247 = smul.addr %s246, 8
      %s248 = scalar_lea.vmem %s0, %s247
      %p249 = pneg %p39
      %p250 = pneg %p36
      %p251 = pneg %p60
      %p252 = pneg %p57
      %p253 = pneg %p81
      %p254 = pneg %p78
      %p255 = pneg %p102
      %p256 = pneg %p99
      %p257 = pneg %p123
      %p258 = pneg %p120
      %p259 = pneg %p144
      %p260 = pneg %p141
      %p261 = pneg %p165
      %p262 = pneg %p162
      %p263 = pneg %p191
      %p264 = pneg %p188
      %s265 = smul.u32 64, %s18
      %p266 = scmp.lt.s32.totalorder %s265, 127
      %s267 = scalar_select %p266, %s265, 127
      %s268 = smul.addr %s267, 4
      %s269 = scalar_lea.vmem %s7, %s268
      %s270 = smul.u32 64, %s18
      %p271 = scmp.lt.s32.totalorder %s270, 127
      %s272 = scalar_select %p271, %s270, 127
      %s273 = smul.addr %s272, 8
      %s274 = scalar_lea.vmem %s0, %s273
      %s275 = smul.u32 64, %s18
      %s276 = smul.u32 64, %s18
      %p277 = scmp.lt.s32.totalorder %s276, 127
      %s278 = scalar_select %p277, %s276, 127
      %s279 = smul.addr %s278, 4
      %s280 = scalar_lea.vmem %s7, %s279
      %s281 = smul.u32 64, %s18
      %v283 = vld [vmem:[%s274] sm:$0xff]
      %v284 = vld [vmem:[%s274 + $0x8] sm:$0xff]
      %v285 = vld [vmem:[%s274 + $0x10] sm:$0xff]
      %v286 = vld [vmem:[%s274 + $0x18] sm:$0xff]
      %v287 = vld [vmem:[%s274 + $0x20] sm:$0xff]
      %v288 = vld [vmem:[%s274 + $0x28] sm:$0xff]
      %v289 = vld [vmem:[%s274 + $0x30] sm:$0xff]
      %v290 = vld [vmem:[%s274 + $0x38] sm:$0xff]
      %v291 = vld [vmem:[%s274 + $0x40] sm:$0xff]
      %v292 = vld [vmem:[%s274 + $0x48] sm:$0xff]
      %v293 = vld [vmem:[%s274 + $0x50] sm:$0xff]
      %v294 = vld [vmem:[%s274 + $0x58] sm:$0xff]
      %v295 = vld [vmem:[%s274 + $0x60] sm:$0xff]
      %v296 = vld [vmem:[%s274 + $0x68] sm:$0xff]
      %v297 = vld [vmem:[%s274 + $0x70] sm:$0xff]
      %v298 = vld [vmem:[%s274 + $0x78] sm:$0xff]
      %v299 = vld [vmem:[%s274 + $0x80] sm:$0xff]
      %v300 = vld [vmem:[%s274 + $0x88] sm:$0xff]
      %v301 = vld [vmem:[%s274 + $0x90] sm:$0xff]
      %v302 = vld [vmem:[%s274 + $0x98] sm:$0xff]
      %v303 = vld [vmem:[%s274 + $0xa0] sm:$0xff]
      %v304 = vld [vmem:[%s274 + $0xa8] sm:$0xff]
      %v305 = vld [vmem:[%s274 + $0xb0] sm:$0xff]
      %v306 = vld [vmem:[%s274 + $0xb8] sm:$0xff]
      %v307 = vld [vmem:[%s274 + $0xc0] sm:$0xff]
      %v308 = vld [vmem:[%s274 + $0xc8] sm:$0xff]
      %v309 = vld [vmem:[%s274 + $0xd0] sm:$0xff]
      %v310 = vld [vmem:[%s274 + $0xd8] sm:$0xff]
      %v311 = vld [vmem:[%s274 + $0xe0] sm:$0xff]
      %v312 = vld [vmem:[%s274 + $0xe8] sm:$0xff]
      %v313 = vld [vmem:[%s274 + $0xf0] sm:$0xff]
      %v314 = vld [vmem:[%s274 + $0xf8] sm:$0xff]
      %v315 = vld [vmem:[%s274 + $0x100] sm:$0xff]
      %v316 = vld [vmem:[%s274 + $0x108] sm:$0xff]
      %v317 = vld [vmem:[%s274 + $0x110] sm:$0xff]
      %v318 = vld [vmem:[%s274 + $0x118] sm:$0xff]
      %v319 = vld [vmem:[%s274 + $0x120] sm:$0xff]
      %v320 = vld [vmem:[%s274 + $0x128] sm:$0xff]
      %v321 = vld [vmem:[%s274 + $0x130] sm:$0xff]
      %v322 = vld [vmem:[%s274 + $0x138] sm:$0xff]
      %v323 = vld [vmem:[%s274 + $0x140] sm:$0xff]
      %v324 = vld [vmem:[%s274 + $0x148] sm:$0xff]
      %v325 = vld [vmem:[%s274 + $0x150] sm:$0xff]
      %v326 = vld [vmem:[%s274 + $0x158] sm:$0xff]
      %v327 = vld [vmem:[%s274 + $0x160] sm:$0xff]
      %v328 = vld [vmem:[%s274 + $0x168] sm:$0xff]
      %v329 = vld [vmem:[%s274 + $0x170] sm:$0xff]
      %v330 = vld [vmem:[%s274 + $0x178] sm:$0xff]
      %v331 = vld [vmem:[%s274 + $0x180] sm:$0xff]
      %v332 = vld [vmem:[%s274 + $0x188] sm:$0xff]
      %v333 = vld [vmem:[%s274 + $0x190] sm:$0xff]
      %v334 = vld [vmem:[%s274 + $0x198] sm:$0xff]
      %v335 = vld [vmem:[%s274 + $0x1a0] sm:$0xff]
      %v336 = vld [vmem:[%s274 + $0x1a8] sm:$0xff]
      %v337 = vld [vmem:[%s274 + $0x1b0] sm:$0xff]
      %v338 = vld [vmem:[%s274 + $0x1b8] sm:$0xff]
      %v339 = vld [vmem:[%s274 + $0x1c0] sm:$0xff]
      %v340 = vld [vmem:[%s274 + $0x1c8] sm:$0xff]
      %v341 = vld [vmem:[%s274 + $0x1d0] sm:$0xff]
      %v342 = vld [vmem:[%s274 + $0x1d8] sm:$0xff]
      %v343 = vld [vmem:[%s274 + $0x1e0] sm:$0xff]
      %v344 = vld [vmem:[%s274 + $0x1e8] sm:$0xff]
      %v345 = vld [vmem:[%s274 + $0x1f0] sm:$0xff]
      %v346 = vld [vmem:[%s274 + $0x1f8] sm:$0xff]
      %v347 = vpack.c.bf16 %v284, %v283
      %v348 = vpack.c.bf16 %v286, %v285
      %v349 = vpack.c.bf16 %v288, %v287
      %v350 = vpack.c.bf16 %v290, %v289
      %v351 = vpack.c.bf16 %v292, %v291
      %v352 = vpack.c.bf16 %v294, %v293
      %v353 = vpack.c.bf16 %v296, %v295
      %v354 = vpack.c.bf16 %v298, %v297
      %v355 = vpack.c.bf16 %v300, %v299
      %v356 = vpack.c.bf16 %v302, %v301
      %v357 = vpack.c.bf16 %v304, %v303
      %v358 = vpack.c.bf16 %v306, %v305
      %v359 = vpack.c.bf16 %v308, %v307
      %v360 = vpack.c.bf16 %v310, %v309
      %v361 = vpack.c.bf16 %v312, %v311
      %v362 = vpack.c.bf16 %v314, %v313
      %v363 = vpack.c.bf16 %v316, %v315
      %v364 = vpack.c.bf16 %v318, %v317
      %v365 = vpack.c.bf16 %v320, %v319
      %v366 = vpack.c.bf16 %v322, %v321
      %v367 = vpack.c.bf16 %v324, %v323
      %v368 = vpack.c.bf16 %v326, %v325
      %v369 = vpack.c.bf16 %v328, %v327
      %v370 = vpack.c.bf16 %v330, %v329
      %v371 = vpack.c.bf16 %v332, %v331
      %v372 = vpack.c.bf16 %v334, %v333
      %v373 = vpack.c.bf16 %v336, %v335
      %v374 = vpack.c.bf16 %v338, %v337
      %v375 = vpack.c.bf16 %v340, %v339
      %v376 = vpack.c.bf16 %v342, %v341
      %v377 = vpack.c.bf16 %v344, %v343
      %v378 = vpack.c.bf16 %v346, %v345
      %v379 = vld [vmem:[%s1] sm:$0xff]
      %v380 = vld [vmem:[%s1 + $0x8] sm:$0xff]
      %v381 = vld [vmem:[%s1 + $0x10] sm:$0xff]
      %v382 = vld [vmem:[%s1 + $0x18] sm:$0xff]
      %v383 = vld [vmem:[%s1 + $0x20] sm:$0xff]
      %v384 = vld [vmem:[%s1 + $0x28] sm:$0xff]
      %v385 = vld [vmem:[%s1 + $0x30] sm:$0xff]
      %v386 = vld [vmem:[%s1 + $0x38] sm:$0xff]
      %v387 = vld [vmem:[%s2] sm:$0x3]
      %v389 = vlaneseq
      %v390 = vshrl.u32 %v389, 7
      %v391 = vsub.s32 0, %v390
      %v392 = vrot.slane %v387, %v391
      %v393 = vlaneseq
      %v394 = vshrl.u32 %v393, 7
      %v395 = vsub.s32 1, %v394
      %v396 = vrot.slane %v387, %v395
      %v407 = vunpack.c.l.b16 %v379
      %v408 = vunpack.c.h.b16 %v379
      %v409 = vunpack.c.l.b16 %v380
      %v410 = vunpack.c.h.b16 %v380
      %v411 = vunpack.c.l.b16 %v381
      %v412 = vunpack.c.h.b16 %v381
      %v413 = vunpack.c.l.b16 %v382
      %v414 = vunpack.c.h.b16 %v382
      %v415 = vunpack.c.l.b16 %v383
      %v416 = vunpack.c.h.b16 %v383
      %v417 = vunpack.c.l.b16 %v384
      %v418 = vunpack.c.h.b16 %v384
      %v419 = vunpack.c.l.b16 %v385
      %v420 = vunpack.c.h.b16 %v385
      %v421 = vunpack.c.l.b16 %v386
      %v422 = vunpack.c.h.b16 %v386
      %v423 = vpack.c.b16 %v409, %v407
      %v424 = vpack.c.b16 %v410, %v408
      %v425 = vpack.c.b16 %v413, %v411
      %v426 = vpack.c.b16 %v414, %v412
      %v427 = vpack.c.b16 %v417, %v415
      %v428 = vpack.c.b16 %v418, %v416
      %v429 = vpack.c.b16 %v421, %v419
      %v430 = vpack.c.b16 %v422, %v420
      %vm439 = vcmask 523264
      %v441 = vsel %vm439, %v347, 0
      %v444 = vsel %vm439, %v348, 0
      %v447 = vsel %vm439, %v349, 0
      %v450 = vsel %vm439, %v350, 0
      %v453 = vsel %vm439, %v351, 0
      %v456 = vsel %vm439, %v352, 0
      %v459 = vsel %vm439, %v353, 0
      %v462 = vsel %vm439, %v354, 0
      %v465 = vsel %vm439, %v355, 0
      %v468 = vsel %vm439, %v356, 0
      %v471 = vsel %vm439, %v357, 0
      %v474 = vsel %vm439, %v358, 0
      %v477 = vsel %vm439, %v359, 0
      %v480 = vsel %vm439, %v360, 0
      %v483 = vsel %vm439, %v361, 0
      %v486 = vsel %vm439, %v362, 0
      %v489 = vsel %vm439, %v363, 0
      %v492 = vsel %vm439, %v364, 0
      %v495 = vsel %vm439, %v365, 0
      %v498 = vsel %vm439, %v366, 0
      %v501 = vsel %vm439, %v367, 0
      %v504 = vsel %vm439, %v368, 0
      %v507 = vsel %vm439, %v369, 0
      %v510 = vsel %vm439, %v370, 0
      %v513 = vsel %vm439, %v371, 0
      %v516 = vsel %vm439, %v372, 0
      %v519 = vsel %vm439, %v373, 0
      %v522 = vsel %vm439, %v374, 0
      %v525 = vsel %vm439, %v375, 0
      %v528 = vsel %vm439, %v376, 0
      %v531 = vsel %vm439, %v377, 0
      %v534 = vsel %vm439, %v378, 0
      %536 = vmatprep.subr.bf16.mxu0 %v424
      %537 = vmatpush1.bf16.msra.mxu0 %v423
      %538 = vmatprep.subr.bf16.mxu0 %v426
      %539 = vmatpush1.bf16.msra.mxu0 %v425
      %540 = vmatprep.subr.bf16.mxu0 %v428
      %541 = vmatpush1.bf16.msra.mxu0 %v427
      %542 = vmatprep.subr.bf16.mxu0 %v430
      %543 = vmatpush1.bf16.msra.mxu0 %v429
      %544 = vmatprep.subr.bf16.mxu0 0
      %545 = vmatpush1.bf16.msra.mxu0 0
      %546 = vmatprep.subr.bf16.mxu0 0
      %547 = vmatpush1.bf16.msra.mxu0 0
      %548 = vmatprep.subr.bf16.mxu0 0
      %549 = vmatpush1.bf16.msra.mxu0 0
      %550 = vmatprep.subr.bf16.mxu0 0
      %551 = vmatpush1.bf16.msra.mxu0 0
      %552 = vmatprep.subr.bf16.mxu0 0
      %553 = vmatpush1.bf16.msra.mxu0 0
      %554 = vmatprep.subr.bf16.mxu0 0
      %555 = vmatpush1.bf16.msra.mxu0 0
      %556 = vmatprep.subr.bf16.mxu0 0
      %557 = vmatpush1.bf16.msra.mxu0 0
      %558 = vmatprep.subr.bf16.mxu0 0
      %559 = vmatpush1.bf16.msra.mxu0 0
      %560 = vmatprep.subr.bf16.mxu0 0
      %561 = vmatpush1.bf16.msra.mxu0 0
      %562 = vmatprep.subr.bf16.mxu0 0
      %563 = vmatpush1.bf16.msra.mxu0 0
      %564 = vmatprep.subr.bf16.mxu0 0
      %565 = vmatpush1.bf16.msra.mxu0 0
      %566 = vmatprep.subr.bf16.mxu0 0
      %567 = vmatpush1.bf16.msra.mxu0 0
      %568 = vmatprep.mubr.bf16.mxu0 0
      %569 = vmatmul.mubr.bf16.gmra.mrb[0].mxu0 %v441
      %v570 = vpop.f32.mrb[0].mxu0
      %v571 = vadd.f32 %v392, %v570
      %v572 = vpop.f32.mrb[0].mxu0
      %v573 = vadd.f32 %v396, %v572
      %v574 = vpop.f32.mrb[0].mxu0
      %v575 = vadd.f32 %v392, %v574
      %v576 = vpop.f32.mrb[0].mxu0
      %v577 = vadd.f32 %v396, %v576
      %578 = vmatprep.mubr.bf16.mxu0 0
      %579 = vmatmul.mubr.bf16.gmra.mrb[0].mxu0 %v444
      %v580 = vpop.f32.mrb[0].mxu0
      %v581 = vadd.f32 %v392, %v580
      %v582 = vpop.f32.mrb[0].mxu0
      %v583 = vadd.f32 %v396, %v582
      %v584 = vpop.f32.mrb[0].mxu0
      %v585 = vadd.f32 %v392, %v584
      %v586 = vpop.f32.mrb[0].mxu0
      %v587 = vadd.f32 %v396, %v586
      %588 = vmatprep.mubr.bf16.mxu0 0
      %589 = vmatmul.mubr.bf16.gmra.mrb[0].mxu0 %v447
      %v590 = vpop.f32.mrb[0].mxu0
      %v591 = vadd.f32 %v392, %v590
      %v592 = vpop.f32.mrb[0].mxu0
      %v593 = vadd.f32 %v396, %v592
      %v594 = vpop.f32.mrb[0].mxu0
      %v595 = vadd.f32 %v392, %v594
      %v596 = vpop.f32.mrb[0].mxu0
      %v597 = vadd.f32 %v396, %v596
      %598 = vmatprep.mubr.bf16.mxu0 0
      %599 = vmatmul.mubr.bf16.gmra.mrb[0].mxu0 %v450
      %v600 = vpop.f32.mrb[0].mxu0
      %v601 = vadd.f32 %v392, %v600
      %v602 = vpop.f32.mrb[0].mxu0
      %v603 = vadd.f32 %v396, %v602
      %v604 = vpop.f32.mrb[0].mxu0
      %v605 = vadd.f32 %v392, %v604
      %v606 = vpop.f32.mrb[0].mxu0
      %v607 = vadd.f32 %v396, %v606
      %608 = vmatprep.mubr.bf16.mxu0 0
      %609 = vmatmul.mubr.bf16.gmra.mrb[0].mxu0 %v453
      %v610 = vpop.f32.mrb[0].mxu0
      %v611 = vadd.f32 %v392, %v610
      %v612 = vpop.f32.mrb[0].mxu0
      %v613 = vadd.f32 %v396, %v612
      %v614 = vpop.f32.mrb[0].mxu0
      %v615 = vadd.f32 %v392, %v614
      %v616 = vpop.f32.mrb[0].mxu0
      %v617 = vadd.f32 %v396, %v616
      %618 = vmatprep.mubr.bf16.mxu0 0
      %619 = vmatmul.mubr.bf16.gmra.mrb[0].mxu0 %v456
      %v620 = vpop.f32.mrb[0].mxu0
      %v621 = vadd.f32 %v392, %v620
      %v622 = vpop.f32.mrb[0].mxu0
      %v623 = vadd.f32 %v396, %v622
      %v624 = vpop.f32.mrb[0].mxu0
      %v625 = vadd.f32 %v392, %v624
      %v626 = vpop.f32.mrb[0].mxu0
      %v627 = vadd.f32 %v396, %v626
      %628 = vmatprep.mubr.bf16.mxu0 0
      %629 = vmatmul.mubr.bf16.gmra.mrb[0].mxu0 %v459
      %v630 = vpop.f32.mrb[0].mxu0
      %v631 = vadd.f32 %v392, %v630
      %v632 = vpop.f32.mrb[0].mxu0
      %v633 = vadd.f32 %v396, %v632
      %v634 = vpop.f32.mrb[0].mxu0
      %v635 = vadd.f32 %v392, %v634
      %v636 = vpop.f32.mrb[0].mxu0
      %v637 = vadd.f32 %v396, %v636
      %638 = vmatprep.mubr.bf16.mxu0 0
      %639 = vmatmul.mubr.bf16.gmra.mrb[0].mxu0 %v462
      %v640 = vpop.f32.mrb[0].mxu0
      %v641 = vadd.f32 %v392, %v640
      %v642 = vpop.f32.mrb[0].mxu0
      %v643 = vadd.f32 %v396, %v642
      %v644 = vpop.f32.mrb[0].mxu0
      %v645 = vadd.f32 %v392, %v644
      %v646 = vpop.f32.mrb[0].mxu0
      %v647 = vadd.f32 %v396, %v646
      %648 = vmatprep.mubr.bf16.mxu0 0
      %649 = vmatmul.mubr.bf16.gmra.mrb[0].mxu0 %v465
      %v650 = vpop.f32.mrb[0].mxu0
      %v651 = vadd.f32 %v392, %v650
      %v652 = vpop.f32.mrb[0].mxu0
      %v653 = vadd.f32 %v396, %v652
      %v654 = vpop.f32.mrb[0].mxu0
      %v655 = vadd.f32 %v392, %v654
      %v656 = vpop.f32.mrb[0].mxu0
      %v657 = vadd.f32 %v396, %v656
      %658 = vmatprep.mubr.bf16.mxu0 0
      %659 = vmatmul.mubr.bf16.gmra.mrb[0].mxu0 %v468
      %v660 = vpop.f32.mrb[0].mxu0
      %v661 = vadd.f32 %v392, %v660
      %v662 = vpop.f32.mrb[0].mxu0
      %v663 = vadd.f32 %v396, %v662
      %v664 = vpop.f32.mrb[0].mxu0
      %v665 = vadd.f32 %v392, %v664
      %v666 = vpop.f32.mrb[0].mxu0
      %v667 = vadd.f32 %v396, %v666
      %668 = vmatprep.mubr.bf16.mxu0 0
      %669 = vmatmul.mubr.bf16.gmra.mrb[0].mxu0 %v471
      %v670 = vpop.f32.mrb[0].mxu0
      %v671 = vadd.f32 %v392, %v670
      %v672 = vpop.f32.mrb[0].mxu0
      %v673 = vadd.f32 %v396, %v672
      %v674 = vpop.f32.mrb[0].mxu0
      %v675 = vadd.f32 %v392, %v674
      %v676 = vpop.f32.mrb[0].mxu0
      %v677 = vadd.f32 %v396, %v676
      %678 = vmatprep.mubr.bf16.mxu0 0
      %679 = vmatmul.mubr.bf16.gmra.mrb[0].mxu0 %v474
      %v680 = vpop.f32.mrb[0].mxu0
      %v681 = vadd.f32 %v392, %v680
      %v682 = vpop.f32.mrb[0].mxu0
      %v683 = vadd.f32 %v396, %v682
      %v684 = vpop.f32.mrb[0].mxu0
      %v685 = vadd.f32 %v392, %v684
      %v686 = vpop.f32.mrb[0].mxu0
      %v687 = vadd.f32 %v396, %v686
      %688 = vmatprep.mubr.bf16.mxu0 0
      %689 = vmatmul.mubr.bf16.gmra.mrb[0].mxu0 %v477
      %v690 = vpop.f32.mrb[0].mxu0
      %v691 = vadd.f32 %v392, %v690
      %v692 = vpop.f32.mrb[0].mxu0
      %v693 = vadd.f32 %v396, %v692
      %v694 = vpop.f32.mrb[0].mxu0
      %v695 = vadd.f32 %v392, %v694
      %v696 = vpop.f32.mrb[0].mxu0
      %v697 = vadd.f32 %v396, %v696
      %698 = vmatprep.mubr.bf16.mxu0 0
      %699 = vmatmul.mubr.bf16.gmra.mrb[0].mxu0 %v480
      %v700 = vpop.f32.mrb[0].mxu0
      %v701 = vadd.f32 %v392, %v700
      %v702 = vpop.f32.mrb[0].mxu0
      %v703 = vadd.f32 %v396, %v702
      %v704 = vpop.f32.mrb[0].mxu0
      %v705 = vadd.f32 %v392, %v704
      %v706 = vpop.f32.mrb[0].mxu0
      %v707 = vadd.f32 %v396, %v706
      %708 = vmatprep.mubr.bf16.mxu0 0
      %709 = vmatmul.mubr.bf16.gmra.mrb[0].mxu0 %v483
      %v710 = vpop.f32.mrb[0].mxu0
      %v711 = vadd.f32 %v392, %v710
      %v712 = vpop.f32.mrb[0].mxu0
      %v713 = vadd.f32 %v396, %v712
      %v714 = vpop.f32.mrb[0].mxu0
      %v715 = vadd.f32 %v392, %v714
      %v716 = vpop.f32.mrb[0].mxu0
      %v717 = vadd.f32 %v396, %v716
      %718 = vmatprep.mubr.bf16.mxu0 0
      %719 = vmatmul.mubr.bf16.gmra.mrb[0].mxu0 %v486
      %v720 = vpop.f32.mrb[0].mxu0
      %v721 = vadd.f32 %v392, %v720
      %v722 = vpop.f32.mrb[0].mxu0
      %v723 = vadd.f32 %v396, %v722
      %v724 = vpop.f32.mrb[0].mxu0
      %v725 = vadd.f32 %v392, %v724
      %v726 = vpop.f32.mrb[0].mxu0
      %v727 = vadd.f32 %v396, %v726
      %728 = vmatprep.mubr.bf16.mxu0 0
      %729 = vmatmul.mubr.bf16.gmra.mrb[0].mxu0 %v489
      %v730 = vpop.f32.mrb[0].mxu0
      %v731 = vadd.f32 %v392, %v730
      %v732 = vpop.f32.mrb[0].mxu0
      %v733 = vadd.f32 %v396, %v732
      %v734 = vpop.f32.mrb[0].mxu0
      %v735 = vadd.f32 %v392, %v734
      %v736 = vpop.f32.mrb[0].mxu0
      %v737 = vadd.f32 %v396, %v736
      %738 = vmatprep.mubr.bf16.mxu0 0
      %739 = vmatmul.mubr.bf16.gmra.mrb[0].mxu0 %v492
      %v740 = vpop.f32.mrb[0].mxu0
      %v741 = vadd.f32 %v392, %v740
      %v742 = vpop.f32.mrb[0].mxu0
      %v743 = vadd.f32 %v396, %v742
      %v744 = vpop.f32.mrb[0].mxu0
      %v745 = vadd.f32 %v392, %v744
      %v746 = vpop.f32.mrb[0].mxu0
      %v747 = vadd.f32 %v396, %v746
      %748 = vmatprep.mubr.bf16.mxu0 0
      %749 = vmatmul.mubr.bf16.gmra.mrb[0].mxu0 %v495
      %v750 = vpop.f32.mrb[0].mxu0
      %v751 = vadd.f32 %v392, %v750
      %v752 = vpop.f32.mrb[0].mxu0
      %v753 = vadd.f32 %v396, %v752
      %v754 = vpop.f32.mrb[0].mxu0
      %v755 = vadd.f32 %v392, %v754
      %v756 = vpop.f32.mrb[0].mxu0
      %v757 = vadd.f32 %v396, %v756
      %758 = vmatprep.mubr.bf16.mxu0 0
      %759 = vmatmul.mubr.bf16.gmra.mrb[0].mxu0 %v498
      %v760 = vpop.f32.mrb[0].mxu0
      %v761 = vadd.f32 %v392, %v760
      %v762 = vpop.f32.mrb[0].mxu0
      %v763 = vadd.f32 %v396, %v762
      %v764 = vpop.f32.mrb[0].mxu0
      %v765 = vadd.f32 %v392, %v764
      %v766 = vpop.f32.mrb[0].mxu0
      %v767 = vadd.f32 %v396, %v766
      %768 = vmatprep.mubr.bf16.mxu0 0
      %769 = vmatmul.mubr.bf16.gmra.mrb[0].mxu0 %v501
      %v770 = vpop.f32.mrb[0].mxu0
      %v771 = vadd.f32 %v392, %v770
      %v772 = vpop.f32.mrb[0].mxu0
      %v773 = vadd.f32 %v396, %v772
      %v774 = vpop.f32.mrb[0].mxu0
      %v775 = vadd.f32 %v392, %v774
      %v776 = vpop.f32.mrb[0].mxu0
      %v777 = vadd.f32 %v396, %v776
      %778 = vmatprep.mubr.bf16.mxu0 0
      %779 = vmatmul.mubr.bf16.gmra.mrb[0].mxu0 %v504
      %v780 = vpop.f32.mrb[0].mxu0
      %v781 = vadd.f32 %v392, %v780
      %v782 = vpop.f32.mrb[0].mxu0
      %v783 = vadd.f32 %v396, %v782
      %v784 = vpop.f32.mrb[0].mxu0
      %v785 = vadd.f32 %v392, %v784
      %v786 = vpop.f32.mrb[0].mxu0
      %v787 = vadd.f32 %v396, %v786
      %788 = vmatprep.mubr.bf16.mxu0 0
      %789 = vmatmul.mubr.bf16.gmra.mrb[0].mxu0 %v507
      %v790 = vpop.f32.mrb[0].mxu0
      %v791 = vadd.f32 %v392, %v790
      %v792 = vpop.f32.mrb[0].mxu0
      %v793 = vadd.f32 %v396, %v792
      %v794 = vpop.f32.mrb[0].mxu0
      %v795 = vadd.f32 %v392, %v794
      %v796 = vpop.f32.mrb[0].mxu0
      %v797 = vadd.f32 %v396, %v796
      %798 = vmatprep.mubr.bf16.mxu0 0
      %799 = vmatmul.mubr.bf16.gmra.mrb[0].mxu0 %v510
      %v800 = vpop.f32.mrb[0].mxu0
      %v801 = vadd.f32 %v392, %v800
      %v802 = vpop.f32.mrb[0].mxu0
      %v803 = vadd.f32 %v396, %v802
      %v804 = vpop.f32.mrb[0].mxu0
      %v805 = vadd.f32 %v392, %v804
      %v806 = vpop.f32.mrb[0].mxu0
      %v807 = vadd.f32 %v396, %v806
      %808 = vmatprep.mubr.bf16.mxu0 0
      %809 = vmatmul.mubr.bf16.gmra.mrb[0].mxu0 %v513
      %v810 = vpop.f32.mrb[0].mxu0
      %v811 = vadd.f32 %v392, %v810
      %v812 = vpop.f32.mrb[0].mxu0
      %v813 = vadd.f32 %v396, %v812
      %v814 = vpop.f32.mrb[0].mxu0
      %v815 = vadd.f32 %v392, %v814
      %v816 = vpop.f32.mrb[0].mxu0
      %v817 = vadd.f32 %v396, %v816
      %818 = vmatprep.mubr.bf16.mxu0 0
      %819 = vmatmul.mubr.bf16.gmra.mrb[0].mxu0 %v516
      %v820 = vpop.f32.mrb[0].mxu0
      %v821 = vadd.f32 %v392, %v820
      %v822 = vpop.f32.mrb[0].mxu0
      %v823 = vadd.f32 %v396, %v822
      %v824 = vpop.f32.mrb[0].mxu0
      %v825 = vadd.f32 %v392, %v824
      %v826 = vpop.f32.mrb[0].mxu0
      %v827 = vadd.f32 %v396, %v826
      %828 = vmatprep.mubr.bf16.mxu0 0
      %829 = vmatmul.mubr.bf16.gmra.mrb[0].mxu0 %v519
      %v830 = vpop.f32.mrb[0].mxu0
      %v831 = vadd.f32 %v392, %v830
      %v832 = vpop.f32.mrb[0].mxu0
      %v833 = vadd.f32 %v396, %v832
      %v834 = vpop.f32.mrb[0].mxu0
      %v835 = vadd.f32 %v392, %v834
      %v836 = vpop.f32.mrb[0].mxu0
      %v837 = vadd.f32 %v396, %v836
      %838 = vmatprep.mubr.bf16.mxu0 0
      %839 = vmatmul.mubr.bf16.gmra.mrb[0].mxu0 %v522
      %v840 = vpop.f32.mrb[0].mxu0
      %v841 = vadd.f32 %v392, %v840
      %v842 = vpop.f32.mrb[0].mxu0
      %v843 = vadd.f32 %v396, %v842
      %v844 = vpop.f32.mrb[0].mxu0
      %v845 = vadd.f32 %v392, %v844
      %v846 = vpop.f32.mrb[0].mxu0
      %v847 = vadd.f32 %v396, %v846
      %848 = vmatprep.mubr.bf16.mxu0 0
      %849 = vmatmul.mubr.bf16.gmra.mrb[0].mxu0 %v525
      %v850 = vpop.f32.mrb[0].mxu0
      %v851 = vadd.f32 %v392, %v850
      %v852 = vpop.f32.mrb[0].mxu0
      %v853 = vadd.f32 %v396, %v852
      %v854 = vpop.f32.mrb[0].mxu0
      %v855 = vadd.f32 %v392, %v854
      %v856 = vpop.f32.mrb[0].mxu0
      %v857 = vadd.f32 %v396, %v856
      %858 = vmatprep.mubr.bf16.mxu0 0
      %859 = vmatmul.mubr.bf16.gmra.mrb[0].mxu0 %v528
      %v860 = vpop.f32.mrb[0].mxu0
      %v861 = vadd.f32 %v392, %v860
      %v862 = vpop.f32.mrb[0].mxu0
      %v863 = vadd.f32 %v396, %v862
      %v864 = vpop.f32.mrb[0].mxu0
      %v865 = vadd.f32 %v392, %v864
      %v866 = vpop.f32.mrb[0].mxu0
      %v867 = vadd.f32 %v396, %v866
      %868 = vmatprep.mubr.bf16.mxu0 0
      %869 = vmatmul.mubr.bf16.gmra.mrb[0].mxu0 %v531
      %v870 = vpop.f32.mrb[0].mxu0
      %v871 = vadd.f32 %v392, %v870
      %v872 = vpop.f32.mrb[0].mxu0
      %v873 = vadd.f32 %v396, %v872
      %v874 = vpop.f32.mrb[0].mxu0
      %v875 = vadd.f32 %v392, %v874
      %v876 = vpop.f32.mrb[0].mxu0
      %v877 = vadd.f32 %v396, %v876
      %878 = vmatprep.mubr.bf16.mxu0 0
      %879 = vmatmul.mubr.bf16.gmra.mrb[0].mxu0 %v534
      %v880 = vpop.f32.mrb[0].mxu0
      %v881 = vadd.f32 %v392, %v880
      %v882 = vpop.f32.mrb[0].mxu0
      %v883 = vadd.f32 %v396, %v882
      %v884 = vpop.f32.mrb[0].mxu0
      %v885 = vadd.f32 %v392, %v884
      %v886 = vpop.f32.mrb[0].mxu0
      %v887 = vadd.f32 %v396, %v886
      %888 = vdwg.mxu0
      %v889 = vmax.f32 %v571, 0.0
      %v890 = vmax.f32 %v573, 0.0
      %v891 = vmax.f32 %v575, 0.0
      %v892 = vmax.f32 %v577, 0.0
      %v893 = vmax.f32 %v581, 0.0
      %v894 = vmax.f32 %v583, 0.0
      %v895 = vmax.f32 %v585, 0.0
      %v896 = vmax.f32 %v587, 0.0
      %v897 = vmax.f32 %v591, 0.0
      %v898 = vmax.f32 %v593, 0.0
      %v899 = vmax.f32 %v595, 0.0
      %v900 = vmax.f32 %v597, 0.0
      %v901 = vmax.f32 %v601, 0.0
      %v902 = vmax.f32 %v603, 0.0
      %v903 = vmax.f32 %v605, 0.0
      %v904 = vmax.f32 %v607, 0.0
      %v905 = vmax.f32 %v611, 0.0
      %v906 = vmax.f32 %v613, 0.0
      %v907 = vmax.f32 %v615, 0.0
      %v908 = vmax.f32 %v617, 0.0
      %v909 = vmax.f32 %v621, 0.0
      %v910 = vmax.f32 %v623, 0.0
      %v911 = vmax.f32 %v625, 0.0
      %v912 = vmax.f32 %v627, 0.0
      %v913 = vmax.f32 %v631, 0.0
      %v914 = vmax.f32 %v633, 0.0
      %v915 = vmax.f32 %v635, 0.0
      %v916 = vmax.f32 %v637, 0.0
      %v917 = vmax.f32 %v641, 0.0
      %v918 = vmax.f32 %v643, 0.0
      %v919 = vmax.f32 %v645, 0.0
      %v920 = vmax.f32 %v647, 0.0
      %v921 = vmax.f32 %v651, 0.0
      %v922 = vmax.f32 %v653, 0.0
      %v923 = vmax.f32 %v655, 0.0
      %v924 = vmax.f32 %v657, 0.0
      %v925 = vmax.f32 %v661, 0.0
      %v926 = vmax.f32 %v663, 0.0
      %v927 = vmax.f32 %v665, 0.0
      %v928 = vmax.f32 %v667, 0.0
      %v929 = vmax.f32 %v671, 0.0
      %v930 = vmax.f32 %v673, 0.0
      %v931 = vmax.f32 %v675, 0.0
      %v932 = vmax.f32 %v677, 0.0
      %v933 = vmax.f32 %v681, 0.0
      %v934 = vmax.f32 %v683, 0.0
      %v935 = vmax.f32 %v685, 0.0
      %v936 = vmax.f32 %v687, 0.0
      %v937 = vmax.f32 %v691, 0.0
      %v938 = vmax.f32 %v693, 0.0
      %v939 = vmax.f32 %v695, 0.0
      %v940 = vmax.f32 %v697, 0.0
      %v941 = vmax.f32 %v701, 0.0
      %v942 = vmax.f32 %v703, 0.0
      %v943 = vmax.f32 %v705, 0.0
      %v944 = vmax.f32 %v707, 0.0
      %v945 = vmax.f32 %v711, 0.0
      %v946 = vmax.f32 %v713, 0.0
      %v947 = vmax.f32 %v715, 0.0
      %v948 = vmax.f32 %v717, 0.0
      %v949 = vmax.f32 %v721, 0.0
      %v950 = vmax.f32 %v723, 0.0
      %v951 = vmax.f32 %v725, 0.0
      %v952 = vmax.f32 %v727, 0.0
      %v953 = vmax.f32 %v731, 0.0
      %v954 = vmax.f32 %v733, 0.0
      %v955 = vmax.f32 %v735, 0.0
      %v956 = vmax.f32 %v737, 0.0
      %v957 = vmax.f32 %v741, 0.0
      %v958 = vmax.f32 %v743, 0.0
      %v959 = vmax.f32 %v745, 0.0
      %v960 = vmax.f32 %v747, 0.0
      %v961 = vmax.f32 %v751, 0.0
      %v962 = vmax.f32 %v753, 0.0
      %v963 = vmax.f32 %v755, 0.0
      %v964 = vmax.f32 %v757, 0.0
      %v965 = vmax.f32 %v761, 0.0
      %v966 = vmax.f32 %v763, 0.0
      %v967 = vmax.f32 %v765, 0.0
      %v968 = vmax.f32 %v767, 0.0
      %v969 = vmax.f32 %v771, 0.0
      %v970 = vmax.f32 %v773, 0.0
      %v971 = vmax.f32 %v775, 0.0
      %v972 = vmax.f32 %v777, 0.0
      %v973 = vmax.f32 %v781, 0.0
      %v974 = vmax.f32 %v783, 0.0
      %v975 = vmax.f32 %v785, 0.0
      %v976 = vmax.f32 %v787, 0.0
      %v977 = vmax.f32 %v791, 0.0
      %v978 = vmax.f32 %v793, 0.0
      %v979 = vmax.f32 %v795, 0.0
      %v980 = vmax.f32 %v797, 0.0
      %v981 = vmax.f32 %v801, 0.0
      %v982 = vmax.f32 %v803, 0.0
      %v983 = vmax.f32 %v805, 0.0
      %v984 = vmax.f32 %v807, 0.0
      %v985 = vmax.f32 %v811, 0.0
      %v986 = vmax.f32 %v813, 0.0
      %v987 = vmax.f32 %v815, 0.0
      %v988 = vmax.f32 %v817, 0.0
      %v989 = vmax.f32 %v821, 0.0
      %v990 = vmax.f32 %v823, 0.0
      %v991 = vmax.f32 %v825, 0.0
      %v992 = vmax.f32 %v827, 0.0
      %v993 = vmax.f32 %v831, 0.0
      %v994 = vmax.f32 %v833, 0.0
      %v995 = vmax.f32 %v835, 0.0
      %v996 = vmax.f32 %v837, 0.0
      %v997 = vmax.f32 %v841, 0.0
      %v998 = vmax.f32 %v843, 0.0
      %v999 = vmax.f32 %v845, 0.0
      %v1000 = vmax.f32 %v847, 0.0
      %v1001 = vmax.f32 %v851, 0.0
      %v1002 = vmax.f32 %v853, 0.0
      %v1003 = vmax.f32 %v855, 0.0
      %v1004 = vmax.f32 %v857, 0.0
      %v1005 = vmax.f32 %v861, 0.0
      %v1006 = vmax.f32 %v863, 0.0
      %v1007 = vmax.f32 %v865, 0.0
      %v1008 = vmax.f32 %v867, 0.0
      %v1009 = vmax.f32 %v871, 0.0
      %v1010 = vmax.f32 %v873, 0.0
      %v1011 = vmax.f32 %v875, 0.0
      %v1012 = vmax.f32 %v877, 0.0
      %v1013 = vmax.f32 %v881, 0.0
      %v1014 = vmax.f32 %v883, 0.0
      %v1015 = vmax.f32 %v885, 0.0
      %v1016 = vmax.f32 %v887, 0.0
      %v1017 = vpack.c.bf16 %v891, %v889
      %v1018 = vpack.c.bf16 %v892, %v890
      %v1019 = vpack.c.bf16 %v895, %v893
      %v1020 = vpack.c.bf16 %v896, %v894
      %v1021 = vpack.c.bf16 %v899, %v897
      %v1022 = vpack.c.bf16 %v900, %v898
      %v1023 = vpack.c.bf16 %v903, %v901
      %v1024 = vpack.c.bf16 %v904, %v902
      %v1025 = vpack.c.bf16 %v907, %v905
      %v1026 = vpack.c.bf16 %v908, %v906
      %v1027 = vpack.c.bf16 %v911, %v909
      %v1028 = vpack.c.bf16 %v912, %v910
      %v1029 = vpack.c.bf16 %v915, %v913
      %v1030 = vpack.c.bf16 %v916, %v914
      %v1031 = vpack.c.bf16 %v919, %v917
      %v1032 = vpack.c.bf16 %v920, %v918
      %v1033 = vpack.c.bf16 %v923, %v921
      %v1034 = vpack.c.bf16 %v924, %v922
      %v1035 = vpack.c.bf16 %v927, %v925
      %v1036 = vpack.c.bf16 %v928, %v926
      %v1037 = vpack.c.bf16 %v931, %v929
      %v1038 = vpack.c.bf16 %v932, %v930
      %v1039 = vpack.c.bf16 %v935, %v933
      %v1040 = vpack.c.bf16 %v936, %v934
      %v1041 = vpack.c.bf16 %v939, %v937
      %v1042 = vpack.c.bf16 %v940, %v938
      %v1043 = vpack.c.bf16 %v943, %v941
      %v1044 = vpack.c.bf16 %v944, %v942
      %v1045 = vpack.c.bf16 %v947, %v945
      %v1046 = vpack.c.bf16 %v948, %v946
      %v1047 = vpack.c.bf16 %v951, %v949
      %v1048 = vpack.c.bf16 %v952, %v950
      %v1049 = vpack.c.bf16 %v955, %v953
      %v1050 = vpack.c.bf16 %v956, %v954
      %v1051 = vpack.c.bf16 %v959, %v957
      %v1052 = vpack.c.bf16 %v960, %v958
      %v1053 = vpack.c.bf16 %v963, %v961
      %v1054 = vpack.c.bf16 %v964, %v962
      %v1055 = vpack.c.bf16 %v967, %v965
      %v1056 = vpack.c.bf16 %v968, %v966
      %v1057 = vpack.c.bf16 %v971, %v969
      %v1058 = vpack.c.bf16 %v972, %v970
      %v1059 = vpack.c.bf16 %v975, %v973
      %v1060 = vpack.c.bf16 %v976, %v974
      %v1061 = vpack.c.bf16 %v979, %v977
      %v1062 = vpack.c.bf16 %v980, %v978
      %v1063 = vpack.c.bf16 %v983, %v981
      %v1064 = vpack.c.bf16 %v984, %v982
      %v1065 = vpack.c.bf16 %v987, %v985
      %v1066 = vpack.c.bf16 %v988, %v986
      %v1067 = vpack.c.bf16 %v991, %v989
      %v1068 = vpack.c.bf16 %v992, %v990
      %v1069 = vpack.c.bf16 %v995, %v993
      %v1070 = vpack.c.bf16 %v996, %v994
      %v1071 = vpack.c.bf16 %v999, %v997
      %v1072 = vpack.c.bf16 %v1000, %v998
      %v1073 = vpack.c.bf16 %v1003, %v1001
      %v1074 = vpack.c.bf16 %v1004, %v1002
      %v1075 = vpack.c.bf16 %v1007, %v1005
      %v1076 = vpack.c.bf16 %v1008, %v1006
      %v1077 = vpack.c.bf16 %v1011, %v1009
      %v1078 = vpack.c.bf16 %v1012, %v1010
      %v1079 = vpack.c.bf16 %v1015, %v1013
      %v1080 = vpack.c.bf16 %v1016, %v1014
      %v1081 = vld [vmem:[%s3] sm:$0xf]
      %v1082 = vld [vmem:[%s3 + $0x4] sm:$0xf]
      %v1083 = vld [vmem:[%s3 + $0x8] sm:$0xf]
      %v1084 = vld [vmem:[%s3 + $0xc] sm:$0xf]
      %v1085 = vld [vmem:[%s3 + $0x10] sm:$0xf]
      %v1086 = vld [vmem:[%s3 + $0x14] sm:$0xf]
      %v1087 = vld [vmem:[%s3 + $0x18] sm:$0xf]
      %v1088 = vld [vmem:[%s3 + $0x1c] sm:$0xf]
      %v1089 = vld [vmem:[%s3 + $0x20] sm:$0xf]
      %v1090 = vld [vmem:[%s3 + $0x24] sm:$0xf]
      %v1091 = vld [vmem:[%s3 + $0x28] sm:$0xf]
      %v1092 = vld [vmem:[%s3 + $0x2c] sm:$0xf]
      %v1093 = vld [vmem:[%s3 + $0x30] sm:$0xf]
      %v1094 = vld [vmem:[%s3 + $0x34] sm:$0xf]
      %v1095 = vld [vmem:[%s3 + $0x38] sm:$0xf]
      %v1096 = vld [vmem:[%s3 + $0x3c] sm:$0xf]
      %v1097 = vld [vmem:[%s3 + $0x40] sm:$0xf]
      %v1098 = vld [vmem:[%s3 + $0x44] sm:$0xf]
      %v1099 = vld [vmem:[%s3 + $0x48] sm:$0xf]
      %v1100 = vld [vmem:[%s3 + $0x4c] sm:$0xf]
      %v1101 = vld [vmem:[%s3 + $0x50] sm:$0xf]
      %v1102 = vld [vmem:[%s3 + $0x54] sm:$0xf]
      %v1103 = vld [vmem:[%s3 + $0x58] sm:$0xf]
      %v1104 = vld [vmem:[%s3 + $0x5c] sm:$0xf]
      %v1105 = vld [vmem:[%s3 + $0x60] sm:$0xf]
      %v1106 = vld [vmem:[%s3 + $0x64] sm:$0xf]
      %v1107 = vld [vmem:[%s3 + $0x68] sm:$0xf]
      %v1108 = vld [vmem:[%s3 + $0x6c] sm:$0xf]
      %v1109 = vld [vmem:[%s3 + $0x70] sm:$0xf]
      %v1110 = vld [vmem:[%s3 + $0x74] sm:$0xf]
      %v1111 = vld [vmem:[%s3 + $0x78] sm:$0xf]
      %v1112 = vld [vmem:[%s3 + $0x7c] sm:$0xf]
      %v1113 = vld [vmem:[%s4] sm:$0x1]
      %v1115 = vlaneseq
      %v1116 = vshrl.u32 %v1115, 7
      %v1117 = vsub.s32 0, %v1116
      %v1118 = vrot.slane %v1113, %v1117
      %v1152 = vunpack.c.l.b16 %v1081
      %v1153 = vunpack.c.l.b16 %v1082
      %v1154 = vunpack.c.l.b16 %v1083
      %v1155 = vunpack.c.l.b16 %v1084
      %v1156 = vunpack.c.l.b16 %v1085
      %v1157 = vunpack.c.l.b16 %v1086
      %v1158 = vunpack.c.l.b16 %v1087
      %v1159 = vunpack.c.l.b16 %v1088
      %v1160 = vunpack.c.l.b16 %v1089
      %v1161 = vunpack.c.l.b16 %v1090
      %v1162 = vunpack.c.l.b16 %v1091
      %v1163 = vunpack.c.l.b16 %v1092
      %v1164 = vunpack.c.l.b16 %v1093
      %v1165 = vunpack.c.l.b16 %v1094
      %v1166 = vunpack.c.l.b16 %v1095
      %v1167 = vunpack.c.l.b16 %v1096
      %v1168 = vunpack.c.l.b16 %v1097
      %v1169 = vunpack.c.l.b16 %v1098
      %v1170 = vunpack.c.l.b16 %v1099
      %v1171 = vunpack.c.l.b16 %v1100
      %v1172 = vunpack.c.l.b16 %v1101
      %v1173 = vunpack.c.l.b16 %v1102
      %v1174 = vunpack.c.l.b16 %v1103
      %v1175 = vunpack.c.l.b16 %v1104
      %v1176 = vunpack.c.l.b16 %v1105
      %v1177 = vunpack.c.l.b16 %v1106
      %v1178 = vunpack.c.l.b16 %v1107
      %v1179 = vunpack.c.l.b16 %v1108
      %v1180 = vunpack.c.l.b16 %v1109
      %v1181 = vunpack.c.l.b16 %v1110
      %v1182 = vunpack.c.l.b16 %v1111
      %v1183 = vunpack.c.l.b16 %v1112
      %v1184 = vpack.c.b16 %v1153, %v1152
      %v1185 = vpack.c.b16 %v1155, %v1154
      %v1186 = vpack.c.b16 %v1157, %v1156
      %v1187 = vpack.c.b16 %v1159, %v1158
      %v1188 = vpack.c.b16 %v1161, %v1160
      %v1189 = vpack.c.b16 %v1163, %v1162
      %v1190 = vpack.c.b16 %v1165, %v1164
      %v1191 = vpack.c.b16 %v1167, %v1166
      %v1192 = vpack.c.b16 %v1169, %v1168
      %v1193 = vpack.c.b16 %v1171, %v1170
      %v1194 = vpack.c.b16 %v1173, %v1172
      %v1195 = vpack.c.b16 %v1175, %v1174
      %v1196 = vpack.c.b16 %v1177, %v1176
      %v1197 = vpack.c.b16 %v1179, %v1178
      %v1198 = vpack.c.b16 %v1181, %v1180
      %v1199 = vpack.c.b16 %v1183, %v1182
      %1216 = vmatprep.subr.bf16.mxu0 0
      %1217 = vmatpush1.bf16.msra.mxu0 %v1184
      %1218 = vmatprep.subr.bf16.mxu0 0
      %1219 = vmatpush1.bf16.msra.mxu0 %v1185
      %1220 = vmatprep.subr.bf16.mxu0 0
      %1221 = vmatpush1.bf16.msra.mxu0 %v1186
      %1222 = vmatprep.subr.bf16.mxu0 0
      %1223 = vmatpush1.bf16.msra.mxu0 %v1187
      %1224 = vmatprep.subr.bf16.mxu0 0
      %1225 = vmatpush1.bf16.msra.mxu0 %v1188
      %1226 = vmatprep.subr.bf16.mxu0 0
      %1227 = vmatpush1.bf16.msra.mxu0 %v1189
      %1228 = vmatprep.subr.bf16.mxu0 0
      %1229 = vmatpush1.bf16.msra.mxu0 %v1190
      %1230 = vmatprep.subr.bf16.mxu0 0
      %1231 = vmatpush1.bf16.msra.mxu0 %v1191
      %1232 = vmatprep.subr.bf16.mxu0 0
      %1233 = vmatpush1.bf16.msra.mxu0 %v1192
      %1234 = vmatprep.subr.bf16.mxu0 0
      %1235 = vmatpush1.bf16.msra.mxu0 %v1193
      %1236 = vmatprep.subr.bf16.mxu0 0
      %1237 = vmatpush1.bf16.msra.mxu0 %v1194
      %1238 = vmatprep.subr.bf16.mxu0 0
      %1239 = vmatpush1.bf16.msra.mxu0 %v1195
      %1240 = vmatprep.subr.bf16.mxu0 0
      %1241 = vmatpush1.bf16.msra.mxu0 %v1196
      %1242 = vmatprep.subr.bf16.mxu0 0
      %1243 = vmatpush1.bf16.msra.mxu0 %v1197
      %1244 = vmatprep.subr.bf16.mxu0 0
      %1245 = vmatpush1.bf16.msra.mxu0 %v1198
      %1246 = vmatprep.subr.bf16.mxu0 0
      %1247 = vmatpush1.bf16.msra.mxu0 %v1199
      %1248 = vmatprep.mubr.bf16.mxu0 %v1018
      %1249 = vmatmul.mubr.bf16.gmra.mrb[0].mxu0 %v1017
      %v1250 = vpop.f32.mrb[0].mxu0
      %v1251 = vadd.f32 %v1118, %v1250
      %v1252 = vpop.f32.mrb[0].mxu0
      %v1253 = vpop.f32.mrb[0].mxu0
      %v1254 = vadd.f32 %v1118, %v1253
      %v1255 = vpop.f32.mrb[0].mxu0
      %1256 = vmatprep.mubr.bf16.mxu0 %v1020
      %1257 = vmatmul.mubr.bf16.gmra.mrb[0].mxu0 %v1019
      %v1258 = vpop.f32.mrb[0].mxu0
      %v1259 = vadd.f32 %v1118, %v1258
      %v1260 = vpop.f32.mrb[0].mxu0
      %v1261 = vpop.f32.mrb[0].mxu0
      %v1262 = vadd.f32 %v1118, %v1261
      %v1263 = vpop.f32.mrb[0].mxu0
      %1264 = vmatprep.mubr.bf16.mxu0 %v1022
      %1265 = vmatmul.mubr.bf16.gmra.mrb[0].mxu0 %v1021
      %v1266 = vpop.f32.mrb[0].mxu0
      %v1267 = vadd.f32 %v1118, %v1266
      %v1268 = vpop.f32.mrb[0].mxu0
      %v1269 = vpop.f32.mrb[0].mxu0
      %v1270 = vadd.f32 %v1118, %v1269
      %v1271 = vpop.f32.mrb[0].mxu0
      %1272 = vmatprep.mubr.bf16.mxu0 %v1024
      %1273 = vmatmul.mubr.bf16.gmra.mrb[0].mxu0 %v1023
      %v1274 = vpop.f32.mrb[0].mxu0
      %v1275 = vadd.f32 %v1118, %v1274
      %v1276 = vpop.f32.mrb[0].mxu0
      %v1277 = vpop.f32.mrb[0].mxu0
      %v1278 = vadd.f32 %v1118, %v1277
      %v1279 = vpop.f32.mrb[0].mxu0
      %1280 = vmatprep.mubr.bf16.mxu0 %v1026
      %1281 = vmatmul.mubr.bf16.gmra.mrb[0].mxu0 %v1025
      %v1282 = vpop.f32.mrb[0].mxu0
      %v1283 = vadd.f32 %v1118, %v1282
      %v1284 = vpop.f32.mrb[0].mxu0
      %v1285 = vpop.f32.mrb[0].mxu0
      %v1286 = vadd.f32 %v1118, %v1285
      %v1287 = vpop.f32.mrb[0].mxu0
      %1288 = vmatprep.mubr.bf16.mxu0 %v1028
      %1289 = vmatmul.mubr.bf16.gmra.mrb[0].mxu0 %v1027
      %v1290 = vpop.f32.mrb[0].mxu0
      %v1291 = vadd.f32 %v1118, %v1290
      %v1292 = vpop.f32.mrb[0].mxu0
      %v1293 = vpop.f32.mrb[0].mxu0
      %v1294 = vadd.f32 %v1118, %v1293
      %v1295 = vpop.f32.mrb[0].mxu0
      %1296 = vmatprep.mubr.bf16.mxu0 %v1030
      %1297 = vmatmul.mubr.bf16.gmra.mrb[0].mxu0 %v1029
      %v1298 = vpop.f32.mrb[0].mxu0
      %v1299 = vadd.f32 %v1118, %v1298
      %v1300 = vpop.f32.mrb[0].mxu0
      %v1301 = vpop.f32.mrb[0].mxu0
      %v1302 = vadd.f32 %v1118, %v1301
      %v1303 = vpop.f32.mrb[0].mxu0
      %1304 = vmatprep.mubr.bf16.mxu0 %v1032
      %1305 = vmatmul.mubr.bf16.gmra.mrb[0].mxu0 %v1031
      %v1306 = vpop.f32.mrb[0].mxu0
      %v1307 = vadd.f32 %v1118, %v1306
      %v1308 = vpop.f32.mrb[0].mxu0
      %v1309 = vpop.f32.mrb[0].mxu0
      %v1310 = vadd.f32 %v1118, %v1309
      %v1311 = vpop.f32.mrb[0].mxu0
      %1312 = vmatprep.mubr.bf16.mxu0 %v1034
      %1313 = vmatmul.mubr.bf16.gmra.mrb[0].mxu0 %v1033
      %v1314 = vpop.f32.mrb[0].mxu0
      %v1315 = vadd.f32 %v1118, %v1314
      %v1316 = vpop.f32.mrb[0].mxu0
      %v1317 = vpop.f32.mrb[0].mxu0
      %v1318 = vadd.f32 %v1118, %v1317
      %v1319 = vpop.f32.mrb[0].mxu0
      %1320 = vmatprep.mubr.bf16.mxu0 %v1036
      %1321 = vmatmul.mubr.bf16.gmra.mrb[0].mxu0 %v1035
      %v1322 = vpop.f32.mrb[0].mxu0
      %v1323 = vadd.f32 %v1118, %v1322
      %v1324 = vpop.f32.mrb[0].mxu0
      %v1325 = vpop.f32.mrb[0].mxu0
      %v1326 = vadd.f32 %v1118, %v1325
      %v1327 = vpop.f32.mrb[0].mxu0
      %1328 = vmatprep.mubr.bf16.mxu0 %v1038
      %1329 = vmatmul.mubr.bf16.gmra.mrb[0].mxu0 %v1037
      %v1330 = vpop.f32.mrb[0].mxu0
      %v1331 = vadd.f32 %v1118, %v1330
      %v1332 = vpop.f32.mrb[0].mxu0
      %v1333 = vpop.f32.mrb[0].mxu0
      %v1334 = vadd.f32 %v1118, %v1333
      %v1335 = vpop.f32.mrb[0].mxu0
      %1336 = vmatprep.mubr.bf16.mxu0 %v1040
      %1337 = vmatmul.mubr.bf16.gmra.mrb[0].mxu0 %v1039
      %v1338 = vpop.f32.mrb[0].mxu0
      %v1339 = vadd.f32 %v1118, %v1338
      %v1340 = vpop.f32.mrb[0].mxu0
      %v1341 = vpop.f32.mrb[0].mxu0
      %v1342 = vadd.f32 %v1118, %v1341
      %v1343 = vpop.f32.mrb[0].mxu0
      %1344 = vmatprep.mubr.bf16.mxu0 %v1042
      %1345 = vmatmul.mubr.bf16.gmra.mrb[0].mxu0 %v1041
      %v1346 = vpop.f32.mrb[0].mxu0
      %v1347 = vadd.f32 %v1118, %v1346
      %v1348 = vpop.f32.mrb[0].mxu0
      %v1349 = vpop.f32.mrb[0].mxu0
      %v1350 = vadd.f32 %v1118, %v1349
      %v1351 = vpop.f32.mrb[0].mxu0
      %1352 = vmatprep.mubr.bf16.mxu0 %v1044
      %1353 = vmatmul.mubr.bf16.gmra.mrb[0].mxu0 %v1043
      %v1354 = vpop.f32.mrb[0].mxu0
      %v1355 = vadd.f32 %v1118, %v1354
      %v1356 = vpop.f32.mrb[0].mxu0
      %v1357 = vpop.f32.mrb[0].mxu0
      %v1358 = vadd.f32 %v1118, %v1357
      %v1359 = vpop.f32.mrb[0].mxu0
      %1360 = vmatprep.mubr.bf16.mxu0 %v1046
      %1361 = vmatmul.mubr.bf16.gmra.mrb[0].mxu0 %v1045
      %v1362 = vpop.f32.mrb[0].mxu0
      %v1363 = vadd.f32 %v1118, %v1362
      %v1364 = vpop.f32.mrb[0].mxu0
      %v1365 = vpop.f32.mrb[0].mxu0
      %v1366 = vadd.f32 %v1118, %v1365
      %v1367 = vpop.f32.mrb[0].mxu0
      %1368 = vmatprep.mubr.bf16.mxu0 %v1048
      %1369 = vmatmul.mubr.bf16.gmra.mrb[0].mxu0 %v1047
      %v1370 = vpop.f32.mrb[0].mxu0
      %v1371 = vadd.f32 %v1118, %v1370
      %v1372 = vpop.f32.mrb[0].mxu0
      %v1373 = vpop.f32.mrb[0].mxu0
      %v1374 = vadd.f32 %v1118, %v1373
      %v1375 = vpop.f32.mrb[0].mxu0
      %1376 = vmatprep.mubr.bf16.mxu0 %v1050
      %1377 = vmatmul.mubr.bf16.gmra.mrb[0].mxu0 %v1049
      %v1378 = vpop.f32.mrb[0].mxu0
      %v1379 = vadd.f32 %v1118, %v1378
      %v1380 = vpop.f32.mrb[0].mxu0
      %v1381 = vpop.f32.mrb[0].mxu0
      %v1382 = vadd.f32 %v1118, %v1381
      %v1383 = vpop.f32.mrb[0].mxu0
      %1384 = vmatprep.mubr.bf16.mxu0 %v1052
      %1385 = vmatmul.mubr.bf16.gmra.mrb[0].mxu0 %v1051
      %v1386 = vpop.f32.mrb[0].mxu0
      %v1387 = vadd.f32 %v1118, %v1386
      %v1388 = vpop.f32.mrb[0].mxu0
      %v1389 = vpop.f32.mrb[0].mxu0
      %v1390 = vadd.f32 %v1118, %v1389
      %v1391 = vpop.f32.mrb[0].mxu0
      %1392 = vmatprep.mubr.bf16.mxu0 %v1054
      %1393 = vmatmul.mubr.bf16.gmra.mrb[0].mxu0 %v1053
      %v1394 = vpop.f32.mrb[0].mxu0
      %v1395 = vadd.f32 %v1118, %v1394
      %v1396 = vpop.f32.mrb[0].mxu0
      %v1397 = vpop.f32.mrb[0].mxu0
      %v1398 = vadd.f32 %v1118, %v1397
      %v1399 = vpop.f32.mrb[0].mxu0
      %1400 = vmatprep.mubr.bf16.mxu0 %v1056
      %1401 = vmatmul.mubr.bf16.gmra.mrb[0].mxu0 %v1055
      %v1402 = vpop.f32.mrb[0].mxu0
      %v1403 = vadd.f32 %v1118, %v1402
      %v1404 = vpop.f32.mrb[0].mxu0
      %v1405 = vpop.f32.mrb[0].mxu0
      %v1406 = vadd.f32 %v1118, %v1405
      %v1407 = vpop.f32.mrb[0].mxu0
      %1408 = vmatprep.mubr.bf16.mxu0 %v1058
      %1409 = vmatmul.mubr.bf16.gmra.mrb[0].mxu0 %v1057
      %v1410 = vpop.f32.mrb[0].mxu0
      %v1411 = vadd.f32 %v1118, %v1410
      %v1412 = vpop.f32.mrb[0].mxu0
      %v1413 = vpop.f32.mrb[0].mxu0
      %v1414 = vadd.f32 %v1118, %v1413
      %v1415 = vpop.f32.mrb[0].mxu0
      %1416 = vmatprep.mubr.bf16.mxu0 %v1060
      %1417 = vmatmul.mubr.bf16.gmra.mrb[0].mxu0 %v1059
      %v1418 = vpop.f32.mrb[0].mxu0
      %v1419 = vadd.f32 %v1118, %v1418
      %v1420 = vpop.f32.mrb[0].mxu0
      %v1421 = vpop.f32.mrb[0].mxu0
      %v1422 = vadd.f32 %v1118, %v1421
      %v1423 = vpop.f32.mrb[0].mxu0
      %1424 = vmatprep.mubr.bf16.mxu0 %v1062
      %1425 = vmatmul.mubr.bf16.gmra.mrb[0].mxu0 %v1061
      %v1426 = vpop.f32.mrb[0].mxu0
      %v1427 = vadd.f32 %v1118, %v1426
      %v1428 = vpop.f32.mrb[0].mxu0
      %v1429 = vpop.f32.mrb[0].mxu0
      %v1430 = vadd.f32 %v1118, %v1429
      %v1431 = vpop.f32.mrb[0].mxu0
      %1432 = vmatprep.mubr.bf16.mxu0 %v1064
      %1433 = vmatmul.mubr.bf16.gmra.mrb[0].mxu0 %v1063
      %v1434 = vpop.f32.mrb[0].mxu0
      %v1435 = vadd.f32 %v1118, %v1434
      %v1436 = vpop.f32.mrb[0].mxu0
      %v1437 = vpop.f32.mrb[0].mxu0
      %v1438 = vadd.f32 %v1118, %v1437
      %v1439 = vpop.f32.mrb[0].mxu0
      %1440 = vmatprep.mubr.bf16.mxu0 %v1066
      %1441 = vmatmul.mubr.bf16.gmra.mrb[0].mxu0 %v1065
      %v1442 = vpop.f32.mrb[0].mxu0
      %v1443 = vadd.f32 %v1118, %v1442
      %v1444 = vpop.f32.mrb[0].mxu0
      %v1445 = vpop.f32.mrb[0].mxu0
      %v1446 = vadd.f32 %v1118, %v1445
      %v1447 = vpop.f32.mrb[0].mxu0
      %1448 = vmatprep.mubr.bf16.mxu0 %v1068
      %1449 = vmatmul.mubr.bf16.gmra.mrb[0].mxu0 %v1067
      %v1450 = vpop.f32.mrb[0].mxu0
      %v1451 = vadd.f32 %v1118, %v1450
      %v1452 = vpop.f32.mrb[0].mxu0
      %v1453 = vpop.f32.mrb[0].mxu0
      %v1454 = vadd.f32 %v1118, %v1453
      %v1455 = vpop.f32.mrb[0].mxu0
      %1456 = vmatprep.mubr.bf16.mxu0 %v1070
      %1457 = vmatmul.mubr.bf16.gmra.mrb[0].mxu0 %v1069
      %v1458 = vpop.f32.mrb[0].mxu0
      %v1459 = vadd.f32 %v1118, %v1458
      %v1460 = vpop.f32.mrb[0].mxu0
      %v1461 = vpop.f32.mrb[0].mxu0
      %v1462 = vadd.f32 %v1118, %v1461
      %v1463 = vpop.f32.mrb[0].mxu0
      %1464 = vmatprep.mubr.bf16.mxu0 %v1072
      %1465 = vmatmul.mubr.bf16.gmra.mrb[0].mxu0 %v1071
      %v1466 = vpop.f32.mrb[0].mxu0
      %v1467 = vadd.f32 %v1118, %v1466
      %v1468 = vpop.f32.mrb[0].mxu0
      %v1469 = vpop.f32.mrb[0].mxu0
      %v1470 = vadd.f32 %v1118, %v1469
      %v1471 = vpop.f32.mrb[0].mxu0
      %1472 = vmatprep.mubr.bf16.mxu0 %v1074
      %1473 = vmatmul.mubr.bf16.gmra.mrb[0].mxu0 %v1073
      %v1474 = vpop.f32.mrb[0].mxu0
      %v1475 = vadd.f32 %v1118, %v1474
      %v1476 = vpop.f32.mrb[0].mxu0
      %v1477 = vpop.f32.mrb[0].mxu0
      %v1478 = vadd.f32 %v1118, %v1477
      %v1479 = vpop.f32.mrb[0].mxu0
      %1480 = vmatprep.mubr.bf16.mxu0 %v1076
      %1481 = vmatmul.mubr.bf16.gmra.mrb[0].mxu0 %v1075
      %v1482 = vpop.f32.mrb[0].mxu0
      %v1483 = vadd.f32 %v1118, %v1482
      %v1484 = vpop.f32.mrb[0].mxu0
      %v1485 = vpop.f32.mrb[0].mxu0
      %v1486 = vadd.f32 %v1118, %v1485
      %v1487 = vpop.f32.mrb[0].mxu0
      %1488 = vmatprep.mubr.bf16.mxu0 %v1078
      %1489 = vmatmul.mubr.bf16.gmra.mrb[0].mxu0 %v1077
      %v1490 = vpop.f32.mrb[0].mxu0
      %v1491 = vadd.f32 %v1118, %v1490
      %v1492 = vpop.f32.mrb[0].mxu0
      %v1493 = vpop.f32.mrb[0].mxu0
      %v1494 = vadd.f32 %v1118, %v1493
      %v1495 = vpop.f32.mrb[0].mxu0
      %1496 = vmatprep.mubr.bf16.mxu0 %v1080
      %1497 = vmatmul.mubr.bf16.gmra.mrb[0].mxu0 %v1079
      %v1498 = vpop.f32.mrb[0].mxu0
      %v1499 = vadd.f32 %v1118, %v1498
      %v1500 = vpop.f32.mrb[0].mxu0
      %v1501 = vpop.f32.mrb[0].mxu0
      %v1502 = vadd.f32 %v1118, %v1501
      %v1503 = vpop.f32.mrb[0].mxu0
      %1504 = vdwg.mxu0
      %v1505 = vmax.f32 %v1251, 0.0
      %v1506 = vmax.f32 %v1254, 0.0
      %v1507 = vmax.f32 %v1259, 0.0
      %v1508 = vmax.f32 %v1262, 0.0
      %v1509 = vmax.f32 %v1267, 0.0
      %v1510 = vmax.f32 %v1270, 0.0
      %v1511 = vmax.f32 %v1275, 0.0
      %v1512 = vmax.f32 %v1278, 0.0
      %v1513 = vmax.f32 %v1283, 0.0
      %v1514 = vmax.f32 %v1286, 0.0
      %v1515 = vmax.f32 %v1291, 0.0
      %v1516 = vmax.f32 %v1294, 0.0
      %v1517 = vmax.f32 %v1299, 0.0
      %v1518 = vmax.f32 %v1302, 0.0
      %v1519 = vmax.f32 %v1307, 0.0
      %v1520 = vmax.f32 %v1310, 0.0
      %v1521 = vmax.f32 %v1315, 0.0
      %v1522 = vmax.f32 %v1318, 0.0
      %v1523 = vmax.f32 %v1323, 0.0
      %v1524 = vmax.f32 %v1326, 0.0
      %v1525 = vmax.f32 %v1331, 0.0
      %v1526 = vmax.f32 %v1334, 0.0
      %v1527 = vmax.f32 %v1339, 0.0
      %v1528 = vmax.f32 %v1342, 0.0
      %v1529 = vmax.f32 %v1347, 0.0
      %v1530 = vmax.f32 %v1350, 0.0
      %v1531 = vmax.f32 %v1355, 0.0
      %v1532 = vmax.f32 %v1358, 0.0
      %v1533 = vmax.f32 %v1363, 0.0
      %v1534 = vmax.f32 %v1366, 0.0
      %v1535 = vmax.f32 %v1371, 0.0
      %v1536 = vmax.f32 %v1374, 0.0
      %v1537 = vmax.f32 %v1379, 0.0
      %v1538 = vmax.f32 %v1382, 0.0
      %v1539 = vmax.f32 %v1387, 0.0
      %v1540 = vmax.f32 %v1390, 0.0
      %v1541 = vmax.f32 %v1395, 0.0
      %v1542 = vmax.f32 %v1398, 0.0
      %v1543 = vmax.f32 %v1403, 0.0
      %v1544 = vmax.f32 %v1406, 0.0
      %v1545 = vmax.f32 %v1411, 0.0
      %v1546 = vmax.f32 %v1414, 0.0
      %v1547 = vmax.f32 %v1419, 0.0
      %v1548 = vmax.f32 %v1422, 0.0
      %v1549 = vmax.f32 %v1427, 0.0
      %v1550 = vmax.f32 %v1430, 0.0
      %v1551 = vmax.f32 %v1435, 0.0
      %v1552 = vmax.f32 %v1438, 0.0
      %v1553 = vmax.f32 %v1443, 0.0
      %v1554 = vmax.f32 %v1446, 0.0
      %v1555 = vmax.f32 %v1451, 0.0
      %v1556 = vmax.f32 %v1454, 0.0
      %v1557 = vmax.f32 %v1459, 0.0
      %v1558 = vmax.f32 %v1462, 0.0
      %v1559 = vmax.f32 %v1467, 0.0
      %v1560 = vmax.f32 %v1470, 0.0
      %v1561 = vmax.f32 %v1475, 0.0
      %v1562 = vmax.f32 %v1478, 0.0
      %v1563 = vmax.f32 %v1483, 0.0
      %v1564 = vmax.f32 %v1486, 0.0
      %v1565 = vmax.f32 %v1491, 0.0
      %v1566 = vmax.f32 %v1494, 0.0
      %v1567 = vmax.f32 %v1499, 0.0
      %v1568 = vmax.f32 %v1502, 0.0
      %v1569 = vpack.c.bf16 %v1506, %v1505
      %v1570 = vpack.c.bf16 %v1508, %v1507
      %v1571 = vpack.c.bf16 %v1510, %v1509
      %v1572 = vpack.c.bf16 %v1512, %v1511
      %v1573 = vpack.c.bf16 %v1514, %v1513
      %v1574 = vpack.c.bf16 %v1516, %v1515
      %v1575 = vpack.c.bf16 %v1518, %v1517
      %v1576 = vpack.c.bf16 %v1520, %v1519
      %v1577 = vpack.c.bf16 %v1522, %v1521
      %v1578 = vpack.c.bf16 %v1524, %v1523
      %v1579 = vpack.c.bf16 %v1526, %v1525
      %v1580 = vpack.c.bf16 %v1528, %v1527
      %v1581 = vpack.c.bf16 %v1530, %v1529
      %v1582 = vpack.c.bf16 %v1532, %v1531
      %v1583 = vpack.c.bf16 %v1534, %v1533
      %v1584 = vpack.c.bf16 %v1536, %v1535
      %v1585 = vpack.c.bf16 %v1538, %v1537
      %v1586 = vpack.c.bf16 %v1540, %v1539
      %v1587 = vpack.c.bf16 %v1542, %v1541
      %v1588 = vpack.c.bf16 %v1544, %v1543
      %v1589 = vpack.c.bf16 %v1546, %v1545
      %v1590 = vpack.c.bf16 %v1548, %v1547
      %v1591 = vpack.c.bf16 %v1550, %v1549
      %v1592 = vpack.c.bf16 %v1552, %v1551
      %v1593 = vpack.c.bf16 %v1554, %v1553
      %v1594 = vpack.c.bf16 %v1556, %v1555
      %v1595 = vpack.c.bf16 %v1558, %v1557
      %v1596 = vpack.c.bf16 %v1560, %v1559
      %v1597 = vpack.c.bf16 %v1562, %v1561
      %v1598 = vpack.c.bf16 %v1564, %v1563
      %v1599 = vpack.c.bf16 %v1566, %v1565
      %v1600 = vpack.c.bf16 %v1568, %v1567
      %v1601 = vld [vmem:[%s5] sm:$0xf]
      %v1602 = vld [vmem:[%s5 + $0x4] sm:$0xf]
      %v1603 = vld [vmem:[%s5 + $0x8] sm:$0xf]
      %v1604 = vld [vmem:[%s5 + $0xc] sm:$0xf]
      %v1605 = vld [vmem:[%s5 + $0x10] sm:$0xf]
      %v1606 = vld [vmem:[%s5 + $0x14] sm:$0xf]
      %v1607 = vld [vmem:[%s5 + $0x18] sm:$0xf]
      %v1608 = vld [vmem:[%s5 + $0x1c] sm:$0xf]
      %v1609 = vld [vmem:[%s5 + $0x20] sm:$0xf]
      %v1610 = vld [vmem:[%s5 + $0x24] sm:$0xf]
      %v1611 = vld [vmem:[%s5 + $0x28] sm:$0xf]
      %v1612 = vld [vmem:[%s5 + $0x2c] sm:$0xf]
      %v1613 = vld [vmem:[%s5 + $0x30] sm:$0xf]
      %v1614 = vld [vmem:[%s5 + $0x34] sm:$0xf]
      %v1615 = vld [vmem:[%s5 + $0x38] sm:$0xf]
      %v1616 = vld [vmem:[%s5 + $0x3c] sm:$0xf]
      %v1617 = vld [vmem:[%s6] sm:$0x1]
      %v1619 = vlaneseq
      %v1620 = vshrl.u32 %v1619, 7
      %v1621 = vsub.s32 0, %v1620
      %v1622 = vrot.slane %v1617, %v1621
      %v1640 = vunpack.c.l.b16 %v1601
      %v1641 = vunpack.c.l.b16 %v1602
      %v1642 = vunpack.c.l.b16 %v1603
      %v1643 = vunpack.c.l.b16 %v1604
      %v1644 = vunpack.c.l.b16 %v1605
      %v1645 = vunpack.c.l.b16 %v1606
      %v1646 = vunpack.c.l.b16 %v1607
      %v1647 = vunpack.c.l.b16 %v1608
      %v1648 = vunpack.c.l.b16 %v1609
      %v1649 = vunpack.c.l.b16 %v1610
      %v1650 = vunpack.c.l.b16 %v1611
      %v1651 = vunpack.c.l.b16 %v1612
      %v1652 = vunpack.c.l.b16 %v1613
      %v1653 = vunpack.c.l.b16 %v1614
      %v1654 = vunpack.c.l.b16 %v1615
      %v1655 = vunpack.c.l.b16 %v1616
      %v1656 = vpack.c.b16 %v1641, %v1640
      %v1657 = vpack.c.b16 %v1643, %v1642
      %v1658 = vpack.c.b16 %v1645, %v1644
      %v1659 = vpack.c.b16 %v1647, %v1646
      %v1660 = vpack.c.b16 %v1649, %v1648
      %v1661 = vpack.c.b16 %v1651, %v1650
      %v1662 = vpack.c.b16 %v1653, %v1652
      %v1663 = vpack.c.b16 %v1655, %v1654
      %1672 = vmatprep.subr.bf16.mxu0 0
      %1673 = vmatpush1.bf16.msra.mxu0 %v1656
      %1674 = vmatprep.subr.bf16.mxu0 0
      %1675 = vmatpush1.bf16.msra.mxu0 %v1657
      %1676 = vmatprep.subr.bf16.mxu0 0
      %1677 = vmatpush1.bf16.msra.mxu0 %v1658
      %1678 = vmatprep.subr.bf16.mxu0 0
      %1679 = vmatpush1.bf16.msra.mxu0 %v1659
      %1680 = vmatprep.subr.bf16.mxu0 0
      %1681 = vmatpush1.bf16.msra.mxu0 %v1660
      %1682 = vmatprep.subr.bf16.mxu0 0
      %1683 = vmatpush1.bf16.msra.mxu0 %v1661
      %1684 = vmatprep.subr.bf16.mxu0 0
      %1685 = vmatpush1.bf16.msra.mxu0 %v1662
      %1686 = vmatprep.subr.bf16.mxu0 0
      %1687 = vmatpush1.bf16.msra.mxu0 %v1663
      %1688 = vmatprep.subr.bf16.mxu0 0
      %1689 = vmatpush1.bf16.msra.mxu0 0
      %1690 = vmatprep.subr.bf16.mxu0 0
      %1691 = vmatpush1.bf16.msra.mxu0 0
      %1692 = vmatprep.subr.bf16.mxu0 0
      %1693 = vmatpush1.bf16.msra.mxu0 0
      %1694 = vmatprep.subr.bf16.mxu0 0
      %1695 = vmatpush1.bf16.msra.mxu0 0
      %1696 = vmatprep.subr.bf16.mxu0 0
      %1697 = vmatpush1.bf16.msra.mxu0 0
      %1698 = vmatprep.subr.bf16.mxu0 0
      %1699 = vmatpush1.bf16.msra.mxu0 0
      %1700 = vmatprep.subr.bf16.mxu0 0
      %1701 = vmatpush1.bf16.msra.mxu0 0
      %1702 = vmatprep.subr.bf16.mxu0 0
      %1703 = vmatpush1.bf16.msra.mxu0 0
      %1704 = vmatprep.mubr.bf16.mxu0 0
      %1705 = vmatmul.mubr.bf16.gmra.mrb[0].mxu0 %v1569
      %v1706 = vpop.f32.mrb[0].mxu0
      %v1707 = vadd.f32 %v1622, %v1706
      %v1708 = vpop.f32.mrb[0].mxu0
      %v1709 = vpop.f32.mrb[0].mxu0
      %v1710 = vadd.f32 %v1622, %v1709
      %v1711 = vpop.f32.mrb[0].mxu0
      %1712 = vmatprep.mubr.bf16.mxu0 0
      %1713 = vmatmul.mubr.bf16.gmra.mrb[0].mxu0 %v1570
      %v1714 = vpop.f32.mrb[0].mxu0
      %v1715 = vadd.f32 %v1622, %v1714
      %v1716 = vpop.f32.mrb[0].mxu0
      %v1717 = vpop.f32.mrb[0].mxu0
      %v1718 = vadd.f32 %v1622, %v1717
      %v1719 = vpop.f32.mrb[0].mxu0
      %1720 = vmatprep.mubr.bf16.mxu0 0
      %1721 = vmatmul.mubr.bf16.gmra.mrb[0].mxu0 %v1571
      %v1722 = vpop.f32.mrb[0].mxu0
      %v1723 = vadd.f32 %v1622, %v1722
      %v1724 = vpop.f32.mrb[0].mxu0
      %v1725 = vpop.f32.mrb[0].mxu0
      %v1726 = vadd.f32 %v1622, %v1725
      %v1727 = vpop.f32.mrb[0].mxu0
      %1728 = vmatprep.mubr.bf16.mxu0 0
      %1729 = vmatmul.mubr.bf16.gmra.mrb[0].mxu0 %v1572
      %v1730 = vpop.f32.mrb[0].mxu0
      %v1731 = vadd.f32 %v1622, %v1730
      %v1732 = vpop.f32.mrb[0].mxu0
      %v1733 = vpop.f32.mrb[0].mxu0
      %v1734 = vadd.f32 %v1622, %v1733
      %v1735 = vpop.f32.mrb[0].mxu0
      %1736 = vmatprep.mubr.bf16.mxu0 0
      %1737 = vmatmul.mubr.bf16.gmra.mrb[0].mxu0 %v1573
      %v1738 = vpop.f32.mrb[0].mxu0
      %v1739 = vadd.f32 %v1622, %v1738
      %v1740 = vpop.f32.mrb[0].mxu0
      %v1741 = vpop.f32.mrb[0].mxu0
      %v1742 = vadd.f32 %v1622, %v1741
      %v1743 = vpop.f32.mrb[0].mxu0
      %1744 = vmatprep.mubr.bf16.mxu0 0
      %1745 = vmatmul.mubr.bf16.gmra.mrb[0].mxu0 %v1574
      %v1746 = vpop.f32.mrb[0].mxu0
      %v1747 = vadd.f32 %v1622, %v1746
      %v1748 = vpop.f32.mrb[0].mxu0
      %v1749 = vpop.f32.mrb[0].mxu0
      %v1750 = vadd.f32 %v1622, %v1749
      %v1751 = vpop.f32.mrb[0].mxu0
      %1752 = vmatprep.mubr.bf16.mxu0 0
      %1753 = vmatmul.mubr.bf16.gmra.mrb[0].mxu0 %v1575
      %v1754 = vpop.f32.mrb[0].mxu0
      %v1755 = vadd.f32 %v1622, %v1754
      %v1756 = vpop.f32.mrb[0].mxu0
      %v1757 = vpop.f32.mrb[0].mxu0
      %v1758 = vadd.f32 %v1622, %v1757
      %v1759 = vpop.f32.mrb[0].mxu0
      %1760 = vmatprep.mubr.bf16.mxu0 0
      %1761 = vmatmul.mubr.bf16.gmra.mrb[0].mxu0 %v1576
      %v1762 = vpop.f32.mrb[0].mxu0
      %v1763 = vadd.f32 %v1622, %v1762
      %v1764 = vpop.f32.mrb[0].mxu0
      %v1765 = vpop.f32.mrb[0].mxu0
      %v1766 = vadd.f32 %v1622, %v1765
      %v1767 = vpop.f32.mrb[0].mxu0
      %1768 = vmatprep.mubr.bf16.mxu0 0
      %1769 = vmatmul.mubr.bf16.gmra.mrb[0].mxu0 %v1577
      %v1770 = vpop.f32.mrb[0].mxu0
      %v1771 = vadd.f32 %v1622, %v1770
      %v1772 = vpop.f32.mrb[0].mxu0
      %v1773 = vpop.f32.mrb[0].mxu0
      %v1774 = vadd.f32 %v1622, %v1773
      %v1775 = vpop.f32.mrb[0].mxu0
      %1776 = vmatprep.mubr.bf16.mxu0 0
      %1777 = vmatmul.mubr.bf16.gmra.mrb[0].mxu0 %v1578
      %v1778 = vpop.f32.mrb[0].mxu0
      %v1779 = vadd.f32 %v1622, %v1778
      %v1780 = vpop.f32.mrb[0].mxu0
      %v1781 = vpop.f32.mrb[0].mxu0
      %v1782 = vadd.f32 %v1622, %v1781
      %v1783 = vpop.f32.mrb[0].mxu0
      %1784 = vmatprep.mubr.bf16.mxu0 0
      %1785 = vmatmul.mubr.bf16.gmra.mrb[0].mxu0 %v1579
      %v1786 = vpop.f32.mrb[0].mxu0
      %v1787 = vadd.f32 %v1622, %v1786
      %v1788 = vpop.f32.mrb[0].mxu0
      %v1789 = vpop.f32.mrb[0].mxu0
      %v1790 = vadd.f32 %v1622, %v1789
      %v1791 = vpop.f32.mrb[0].mxu0
      %1792 = vmatprep.mubr.bf16.mxu0 0
      %1793 = vmatmul.mubr.bf16.gmra.mrb[0].mxu0 %v1580
      %v1794 = vpop.f32.mrb[0].mxu0
      %v1795 = vadd.f32 %v1622, %v1794
      %v1796 = vpop.f32.mrb[0].mxu0
      %v1797 = vpop.f32.mrb[0].mxu0
      %v1798 = vadd.f32 %v1622, %v1797
      %v1799 = vpop.f32.mrb[0].mxu0
      %1800 = vmatprep.mubr.bf16.mxu0 0
      %1801 = vmatmul.mubr.bf16.gmra.mrb[0].mxu0 %v1581
      %v1802 = vpop.f32.mrb[0].mxu0
      %v1803 = vadd.f32 %v1622, %v1802
      %v1804 = vpop.f32.mrb[0].mxu0
      %v1805 = vpop.f32.mrb[0].mxu0
      %v1806 = vadd.f32 %v1622, %v1805
      %v1807 = vpop.f32.mrb[0].mxu0
      %1808 = vmatprep.mubr.bf16.mxu0 0
      %1809 = vmatmul.mubr.bf16.gmra.mrb[0].mxu0 %v1582
      %v1810 = vpop.f32.mrb[0].mxu0
      %v1811 = vadd.f32 %v1622, %v1810
      %v1812 = vpop.f32.mrb[0].mxu0
      %v1813 = vpop.f32.mrb[0].mxu0
      %v1814 = vadd.f32 %v1622, %v1813
      %v1815 = vpop.f32.mrb[0].mxu0
      %1816 = vmatprep.mubr.bf16.mxu0 0
      %1817 = vmatmul.mubr.bf16.gmra.mrb[0].mxu0 %v1583
      %v1818 = vpop.f32.mrb[0].mxu0
      %v1819 = vadd.f32 %v1622, %v1818
      %v1820 = vpop.f32.mrb[0].mxu0
      %v1821 = vpop.f32.mrb[0].mxu0
      %v1822 = vadd.f32 %v1622, %v1821
      %v1823 = vpop.f32.mrb[0].mxu0
      %1824 = vmatprep.mubr.bf16.mxu0 0
      %1825 = vmatmul.mubr.bf16.gmra.mrb[0].mxu0 %v1584
      %v1826 = vpop.f32.mrb[0].mxu0
      %v1827 = vadd.f32 %v1622, %v1826
      %v1828 = vpop.f32.mrb[0].mxu0
      %v1829 = vpop.f32.mrb[0].mxu0
      %v1830 = vadd.f32 %v1622, %v1829
      %v1831 = vpop.f32.mrb[0].mxu0
      %1832 = vmatprep.mubr.bf16.mxu0 0
      %1833 = vmatmul.mubr.bf16.gmra.mrb[0].mxu0 %v1585
      %v1834 = vpop.f32.mrb[0].mxu0
      %v1835 = vadd.f32 %v1622, %v1834
      %v1836 = vpop.f32.mrb[0].mxu0
      %v1837 = vpop.f32.mrb[0].mxu0
      %v1838 = vadd.f32 %v1622, %v1837
      %v1839 = vpop.f32.mrb[0].mxu0
      %1840 = vmatprep.mubr.bf16.mxu0 0
      %1841 = vmatmul.mubr.bf16.gmra.mrb[0].mxu0 %v1586
      %v1842 = vpop.f32.mrb[0].mxu0
      %v1843 = vadd.f32 %v1622, %v1842
      %v1844 = vpop.f32.mrb[0].mxu0
      %v1845 = vpop.f32.mrb[0].mxu0
      %v1846 = vadd.f32 %v1622, %v1845
      %v1847 = vpop.f32.mrb[0].mxu0
      %1848 = vmatprep.mubr.bf16.mxu0 0
      %1849 = vmatmul.mubr.bf16.gmra.mrb[0].mxu0 %v1587
      %v1850 = vpop.f32.mrb[0].mxu0
      %v1851 = vadd.f32 %v1622, %v1850
      %v1852 = vpop.f32.mrb[0].mxu0
      %v1853 = vpop.f32.mrb[0].mxu0
      %v1854 = vadd.f32 %v1622, %v1853
      %v1855 = vpop.f32.mrb[0].mxu0
      %1856 = vmatprep.mubr.bf16.mxu0 0
      %1857 = vmatmul.mubr.bf16.gmra.mrb[0].mxu0 %v1588
      %v1858 = vpop.f32.mrb[0].mxu0
      %v1859 = vadd.f32 %v1622, %v1858
      %v1860 = vpop.f32.mrb[0].mxu0
      %v1861 = vpop.f32.mrb[0].mxu0
      %v1862 = vadd.f32 %v1622, %v1861
      %v1863 = vpop.f32.mrb[0].mxu0
      %1864 = vmatprep.mubr.bf16.mxu0 0
      %1865 = vmatmul.mubr.bf16.gmra.mrb[0].mxu0 %v1589
      %v1866 = vpop.f32.mrb[0].mxu0
      %v1867 = vadd.f32 %v1622, %v1866
      %v1868 = vpop.f32.mrb[0].mxu0
      %v1869 = vpop.f32.mrb[0].mxu0
      %v1870 = vadd.f32 %v1622, %v1869
      %v1871 = vpop.f32.mrb[0].mxu0
      %1872 = vmatprep.mubr.bf16.mxu0 0
      %1873 = vmatmul.mubr.bf16.gmra.mrb[0].mxu0 %v1590
      %v1874 = vpop.f32.mrb[0].mxu0
      %v1875 = vadd.f32 %v1622, %v1874
      %v1876 = vpop.f32.mrb[0].mxu0
      %v1877 = vpop.f32.mrb[0].mxu0
      %v1878 = vadd.f32 %v1622, %v1877
      %v1879 = vpop.f32.mrb[0].mxu0
      %1880 = vmatprep.mubr.bf16.mxu0 0
      %1881 = vmatmul.mubr.bf16.gmra.mrb[0].mxu0 %v1591
      %v1882 = vpop.f32.mrb[0].mxu0
      %v1883 = vadd.f32 %v1622, %v1882
      %v1884 = vpop.f32.mrb[0].mxu0
      %v1885 = vpop.f32.mrb[0].mxu0
      %v1886 = vadd.f32 %v1622, %v1885
      %v1887 = vpop.f32.mrb[0].mxu0
      %1888 = vmatprep.mubr.bf16.mxu0 0
      %1889 = vmatmul.mubr.bf16.gmra.mrb[0].mxu0 %v1592
      %v1890 = vpop.f32.mrb[0].mxu0
      %v1891 = vadd.f32 %v1622, %v1890
      %v1892 = vpop.f32.mrb[0].mxu0
      %v1893 = vpop.f32.mrb[0].mxu0
      %v1894 = vadd.f32 %v1622, %v1893
      %v1895 = vpop.f32.mrb[0].mxu0
      %1896 = vmatprep.mubr.bf16.mxu0 0
      %1897 = vmatmul.mubr.bf16.gmra.mrb[0].mxu0 %v1593
      %v1898 = vpop.f32.mrb[0].mxu0
      %v1899 = vadd.f32 %v1622, %v1898
      %v1900 = vpop.f32.mrb[0].mxu0
      %v1901 = vpop.f32.mrb[0].mxu0
      %v1902 = vadd.f32 %v1622, %v1901
      %v1903 = vpop.f32.mrb[0].mxu0
      %1904 = vmatprep.mubr.bf16.mxu0 0
      %1905 = vmatmul.mubr.bf16.gmra.mrb[0].mxu0 %v1594
      %v1906 = vpop.f32.mrb[0].mxu0
      %v1907 = vadd.f32 %v1622, %v1906
      %v1908 = vpop.f32.mrb[0].mxu0
      %v1909 = vpop.f32.mrb[0].mxu0
      %v1910 = vadd.f32 %v1622, %v1909
      %v1911 = vpop.f32.mrb[0].mxu0
      %1912 = vmatprep.mubr.bf16.mxu0 0
      %1913 = vmatmul.mubr.bf16.gmra.mrb[0].mxu0 %v1595
      %v1914 = vpop.f32.mrb[0].mxu0
      %v1915 = vadd.f32 %v1622, %v1914
      %v1916 = vpop.f32.mrb[0].mxu0
      %v1917 = vpop.f32.mrb[0].mxu0
      %v1918 = vadd.f32 %v1622, %v1917
      %v1919 = vpop.f32.mrb[0].mxu0
      %1920 = vmatprep.mubr.bf16.mxu0 0
      %1921 = vmatmul.mubr.bf16.gmra.mrb[0].mxu0 %v1596
      %v1922 = vpop.f32.mrb[0].mxu0
      %v1923 = vadd.f32 %v1622, %v1922
      %v1924 = vpop.f32.mrb[0].mxu0
      %v1925 = vpop.f32.mrb[0].mxu0
      %v1926 = vadd.f32 %v1622, %v1925
      %v1927 = vpop.f32.mrb[0].mxu0
      %1928 = vmatprep.mubr.bf16.mxu0 0
      %1929 = vmatmul.mubr.bf16.gmra.mrb[0].mxu0 %v1597
      %v1930 = vpop.f32.mrb[0].mxu0
      %v1931 = vadd.f32 %v1622, %v1930
      %v1932 = vpop.f32.mrb[0].mxu0
      %v1933 = vpop.f32.mrb[0].mxu0
      %v1934 = vadd.f32 %v1622, %v1933
      %v1935 = vpop.f32.mrb[0].mxu0
      %1936 = vmatprep.mubr.bf16.mxu0 0
      %1937 = vmatmul.mubr.bf16.gmra.mrb[0].mxu0 %v1598
      %v1938 = vpop.f32.mrb[0].mxu0
      %v1939 = vadd.f32 %v1622, %v1938
      %v1940 = vpop.f32.mrb[0].mxu0
      %v1941 = vpop.f32.mrb[0].mxu0
      %v1942 = vadd.f32 %v1622, %v1941
      %v1943 = vpop.f32.mrb[0].mxu0
      %1944 = vmatprep.mubr.bf16.mxu0 0
      %1945 = vmatmul.mubr.bf16.gmra.mrb[0].mxu0 %v1599
      %v1946 = vpop.f32.mrb[0].mxu0
      %v1947 = vadd.f32 %v1622, %v1946
      %v1948 = vpop.f32.mrb[0].mxu0
      %v1949 = vpop.f32.mrb[0].mxu0
      %v1950 = vadd.f32 %v1622, %v1949
      %v1951 = vpop.f32.mrb[0].mxu0
      %1952 = vmatprep.mubr.bf16.mxu0 0
      %1953 = vmatmul.mubr.bf16.gmra.mrb[0].mxu0 %v1600
      %v1954 = vpop.f32.mrb[0].mxu0
      %v1955 = vadd.f32 %v1622, %v1954
      %v1956 = vpop.f32.mrb[0].mxu0
      %v1957 = vpop.f32.mrb[0].mxu0
      %v1958 = vadd.f32 %v1622, %v1957
      %v1959 = vpop.f32.mrb[0].mxu0
      %1960 = vdwg.mxu0
      %v1961 = vmax.f32 %v1707, 0.0
      %v1962 = vmax.f32 %v1710, 0.0
      %v1963 = vmax.f32 %v1715, 0.0
      %v1964 = vmax.f32 %v1718, 0.0
      %v1965 = vmax.f32 %v1723, 0.0
      %v1966 = vmax.f32 %v1726, 0.0
      %v1967 = vmax.f32 %v1731, 0.0
      %v1968 = vmax.f32 %v1734, 0.0
      %v1969 = vmax.f32 %v1739, 0.0
      %v1970 = vmax.f32 %v1742, 0.0
      %v1971 = vmax.f32 %v1747, 0.0
      %v1972 = vmax.f32 %v1750, 0.0
      %v1973 = vmax.f32 %v1755, 0.0
      %v1974 = vmax.f32 %v1758, 0.0
      %v1975 = vmax.f32 %v1763, 0.0
      %v1976 = vmax.f32 %v1766, 0.0
      %v1977 = vmax.f32 %v1771, 0.0
      %v1978 = vmax.f32 %v1774, 0.0
      %v1979 = vmax.f32 %v1779, 0.0
      %v1980 = vmax.f32 %v1782, 0.0
      %v1981 = vmax.f32 %v1787, 0.0
      %v1982 = vmax.f32 %v1790, 0.0
      %v1983 = vmax.f32 %v1795, 0.0
      %v1984 = vmax.f32 %v1798, 0.0
      %v1985 = vmax.f32 %v1803, 0.0
      %v1986 = vmax.f32 %v1806, 0.0
      %v1987 = vmax.f32 %v1811, 0.0
      %v1988 = vmax.f32 %v1814, 0.0
      %v1989 = vmax.f32 %v1819, 0.0
      %v1990 = vmax.f32 %v1822, 0.0
      %v1991 = vmax.f32 %v1827, 0.0
      %v1992 = vmax.f32 %v1830, 0.0
      %v1993 = vmax.f32 %v1835, 0.0
      %v1994 = vmax.f32 %v1838, 0.0
      %v1995 = vmax.f32 %v1843, 0.0
      %v1996 = vmax.f32 %v1846, 0.0
      %v1997 = vmax.f32 %v1851, 0.0
      %v1998 = vmax.f32 %v1854, 0.0
      %v1999 = vmax.f32 %v1859, 0.0
      %v2000 = vmax.f32 %v1862, 0.0
      %v2001 = vmax.f32 %v1867, 0.0
      %v2002 = vmax.f32 %v1870, 0.0
      %v2003 = vmax.f32 %v1875, 0.0
      %v2004 = vmax.f32 %v1878, 0.0
      %v2005 = vmax.f32 %v1883, 0.0
      %v2006 = vmax.f32 %v1886, 0.0
      %v2007 = vmax.f32 %v1891, 0.0
      %v2008 = vmax.f32 %v1894, 0.0
      %v2009 = vmax.f32 %v1899, 0.0
      %v2010 = vmax.f32 %v1902, 0.0
      %v2011 = vmax.f32 %v1907, 0.0
      %v2012 = vmax.f32 %v1910, 0.0
      %v2013 = vmax.f32 %v1915, 0.0
      %v2014 = vmax.f32 %v1918, 0.0
      %v2015 = vmax.f32 %v1923, 0.0
      %v2016 = vmax.f32 %v1926, 0.0
      %v2017 = vmax.f32 %v1931, 0.0
      %v2018 = vmax.f32 %v1934, 0.0
      %v2019 = vmax.f32 %v1939, 0.0
      %v2020 = vmax.f32 %v1942, 0.0
      %v2021 = vmax.f32 %v1947, 0.0
      %v2022 = vmax.f32 %v1950, 0.0
      %v2023 = vmax.f32 %v1955, 0.0
      %v2024 = vmax.f32 %v1958, 0.0
      %v2025 = vpack.c.bf16 %v1962, %v1961
      %v2026 = vpack.c.bf16 %v1964, %v1963
      %v2027 = vpack.c.bf16 %v1966, %v1965
      %v2028 = vpack.c.bf16 %v1968, %v1967
      %v2029 = vpack.c.bf16 %v1970, %v1969
      %v2030 = vpack.c.bf16 %v1972, %v1971
      %v2031 = vpack.c.bf16 %v1974, %v1973
      %v2032 = vpack.c.bf16 %v1976, %v1975
      %v2033 = vpack.c.bf16 %v1978, %v1977
      %v2034 = vpack.c.bf16 %v1980, %v1979
      %v2035 = vpack.c.bf16 %v1982, %v1981
      %v2036 = vpack.c.bf16 %v1984, %v1983
      %v2037 = vpack.c.bf16 %v1986, %v1985
      %v2038 = vpack.c.bf16 %v1988, %v1987
      %v2039 = vpack.c.bf16 %v1990, %v1989
      %v2040 = vpack.c.bf16 %v1992, %v1991
      %v2041 = vpack.c.bf16 %v1994, %v1993
      %v2042 = vpack.c.bf16 %v1996, %v1995
      %v2043 = vpack.c.bf16 %v1998, %v1997
      %v2044 = vpack.c.bf16 %v2000, %v1999
      %v2045 = vpack.c.bf16 %v2002, %v2001
      %v2046 = vpack.c.bf16 %v2004, %v2003
      %v2047 = vpack.c.bf16 %v2006, %v2005
      %v2048 = vpack.c.bf16 %v2008, %v2007
      %v2049 = vpack.c.bf16 %v2010, %v2009
      %v2050 = vpack.c.bf16 %v2012, %v2011
      %v2051 = vpack.c.bf16 %v2014, %v2013
      %v2052 = vpack.c.bf16 %v2016, %v2015
      %v2053 = vpack.c.bf16 %v2018, %v2017
      %v2054 = vpack.c.bf16 %v2020, %v2019
      %v2055 = vpack.c.bf16 %v2022, %v2021
      %v2056 = vpack.c.bf16 %v2024, %v2023
      %v2089 = vunpack.c.l.b16 %v2025
      %v2090 = vunpack.c.h.b16 %v2025
      %v2091 = vunpack.c.l.b16 %v2026
      %v2092 = vunpack.c.h.b16 %v2026
      %v2093 = vunpack.c.l.b16 %v2027
      %v2094 = vunpack.c.h.b16 %v2027
      %v2095 = vunpack.c.l.b16 %v2028
      %v2096 = vunpack.c.h.b16 %v2028
      %v2097 = vunpack.c.l.b16 %v2029
      %v2098 = vunpack.c.h.b16 %v2029
      %v2099 = vunpack.c.l.b16 %v2030
      %v2100 = vunpack.c.h.b16 %v2030
      %v2101 = vunpack.c.l.b16 %v2031
      %v2102 = vunpack.c.h.b16 %v2031
      %v2103 = vunpack.c.l.b16 %v2032
      %v2104 = vunpack.c.h.b16 %v2032
      %v2105 = vunpack.c.l.b16 %v2033
      %v2106 = vunpack.c.h.b16 %v2033
      %v2107 = vunpack.c.l.b16 %v2034
      %v2108 = vunpack.c.h.b16 %v2034
      %v2109 = vunpack.c.l.b16 %v2035
      %v2110 = vunpack.c.h.b16 %v2035
      %v2111 = vunpack.c.l.b16 %v2036
      %v2112 = vunpack.c.h.b16 %v2036
      %v2113 = vunpack.c.l.b16 %v2037
      %v2114 = vunpack.c.h.b16 %v2037
      %v2115 = vunpack.c.l.b16 %v2038
      %v2116 = vunpack.c.h.b16 %v2038
      %v2117 = vunpack.c.l.b16 %v2039
      %v2118 = vunpack.c.h.b16 %v2039
      %v2119 = vunpack.c.l.b16 %v2040
      %v2120 = vunpack.c.h.b16 %v2040
      %v2121 = vunpack.c.l.b16 %v2041
      %v2122 = vunpack.c.h.b16 %v2041
      %v2123 = vunpack.c.l.b16 %v2042
      %v2124 = vunpack.c.h.b16 %v2042
      %v2125 = vunpack.c.l.b16 %v2043
      %v2126 = vunpack.c.h.b16 %v2043
      %v2127 = vunpack.c.l.b16 %v2044
      %v2128 = vunpack.c.h.b16 %v2044
      %v2129 = vunpack.c.l.b16 %v2045
      %v2130 = vunpack.c.h.b16 %v2045
      %v2131 = vunpack.c.l.b16 %v2046
      %v2132 = vunpack.c.h.b16 %v2046
      %v2133 = vunpack.c.l.b16 %v2047
      %v2134 = vunpack.c.h.b16 %v2047
      %v2135 = vunpack.c.l.b16 %v2048
      %v2136 = vunpack.c.h.b16 %v2048
      %v2137 = vunpack.c.l.b16 %v2049
      %v2138 = vunpack.c.h.b16 %v2049
      %v2139 = vunpack.c.l.b16 %v2050
      %v2140 = vunpack.c.h.b16 %v2050
      %v2141 = vunpack.c.l.b16 %v2051
      %v2142 = vunpack.c.h.b16 %v2051
      %v2143 = vunpack.c.l.b16 %v2052
      %v2144 = vunpack.c.h.b16 %v2052
      %v2145 = vunpack.c.l.b16 %v2053
      %v2146 = vunpack.c.h.b16 %v2053
      %v2147 = vunpack.c.l.b16 %v2054
      %v2148 = vunpack.c.h.b16 %v2054
      %v2149 = vunpack.c.l.b16 %v2055
      %v2150 = vunpack.c.h.b16 %v2055
      %v2151 = vunpack.c.l.b16 %v2056
      %v2152 = vunpack.c.h.b16 %v2056
      %v2153 = vpack.c.b16 %v2089, %v2089
      %v2154 = vpack.c.b16 %v2090, %v2090
      %v2155 = vpack.c.b16 %v2091, %v2091
      %v2156 = vpack.c.b16 %v2092, %v2092
      %v2157 = vpack.c.b16 %v2093, %v2093
      %v2158 = vpack.c.b16 %v2094, %v2094
      %v2159 = vpack.c.b16 %v2095, %v2095
      %v2160 = vpack.c.b16 %v2096, %v2096
      %v2161 = vpack.c.b16 %v2097, %v2097
      %v2162 = vpack.c.b16 %v2098, %v2098
      %v2163 = vpack.c.b16 %v2099, %v2099
      %v2164 = vpack.c.b16 %v2100, %v2100
      %v2165 = vpack.c.b16 %v2101, %v2101
      %v2166 = vpack.c.b16 %v2102, %v2102
      %v2167 = vpack.c.b16 %v2103, %v2103
      %v2168 = vpack.c.b16 %v2104, %v2104
      %v2169 = vpack.c.b16 %v2105, %v2105
      %v2170 = vpack.c.b16 %v2106, %v2106
      %v2171 = vpack.c.b16 %v2107, %v2107
      %v2172 = vpack.c.b16 %v2108, %v2108
      %v2173 = vpack.c.b16 %v2109, %v2109
      %v2174 = vpack.c.b16 %v2110, %v2110
      %v2175 = vpack.c.b16 %v2111, %v2111
      %v2176 = vpack.c.b16 %v2112, %v2112
      %v2177 = vpack.c.b16 %v2113, %v2113
      %v2178 = vpack.c.b16 %v2114, %v2114
      %v2179 = vpack.c.b16 %v2115, %v2115
      %v2180 = vpack.c.b16 %v2116, %v2116
      %v2181 = vpack.c.b16 %v2117, %v2117
      %v2182 = vpack.c.b16 %v2118, %v2118
      %v2183 = vpack.c.b16 %v2119, %v2119
      %v2184 = vpack.c.b16 %v2120, %v2120
      %v2185 = vpack.c.b16 %v2121, %v2121
      %v2186 = vpack.c.b16 %v2122, %v2122
      %v2187 = vpack.c.b16 %v2123, %v2123
      %v2188 = vpack.c.b16 %v2124, %v2124
      %v2189 = vpack.c.b16 %v2125, %v2125
      %v2190 = vpack.c.b16 %v2126, %v2126
      %v2191 = vpack.c.b16 %v2127, %v2127
      %v2192 = vpack.c.b16 %v2128, %v2128
      %v2193 = vpack.c.b16 %v2129, %v2129
      %v2194 = vpack.c.b16 %v2130, %v2130
      %v2195 = vpack.c.b16 %v2131, %v2131
      %v2196 = vpack.c.b16 %v2132, %v2132
      %v2197 = vpack.c.b16 %v2133, %v2133
      %v2198 = vpack.c.b16 %v2134, %v2134
      %v2199 = vpack.c.b16 %v2135, %v2135
      %v2200 = vpack.c.b16 %v2136, %v2136
      %v2201 = vpack.c.b16 %v2137, %v2137
      %v2202 = vpack.c.b16 %v2138, %v2138
      %v2203 = vpack.c.b16 %v2139, %v2139
      %v2204 = vpack.c.b16 %v2140, %v2140
      %v2205 = vpack.c.b16 %v2141, %v2141
      %v2206 = vpack.c.b16 %v2142, %v2142
      %v2207 = vpack.c.b16 %v2143, %v2143
      %v2208 = vpack.c.b16 %v2144, %v2144
      %v2209 = vpack.c.b16 %v2145, %v2145
      %v2210 = vpack.c.b16 %v2146, %v2146
      %v2211 = vpack.c.b16 %v2147, %v2147
      %v2212 = vpack.c.b16 %v2148, %v2148
      %v2213 = vpack.c.b16 %v2149, %v2149
      %v2214 = vpack.c.b16 %v2150, %v2150
      %v2215 = vpack.c.b16 %v2151, %v2151
      %v2216 = vpack.c.b16 %v2152, %v2152
      %2281 = vst [vmem:[%s280] sm:$0xf] %v2153
      %2282 = vst [vmem:[%s280 + $0x4] sm:$0xf] %v2154
      %2283 = vst [vmem:[%s280 + $0x8] sm:$0xf] %v2155
      %2284 = vst [vmem:[%s280 + $0xc] sm:$0xf] %v2156
      %2285 = vst [vmem:[%s280 + $0x10] sm:$0xf] %v2157
      %2286 = vst [vmem:[%s280 + $0x14] sm:$0xf] %v2158
      %2287 = vst [vmem:[%s280 + $0x18] sm:$0xf] %v2159
      %2288 = vst [vmem:[%s280 + $0x1c] sm:$0xf] %v2160
      %2289 = vst [vmem:[%s280 + $0x20] sm:$0xf] %v2161
      %2290 = vst [vmem:[%s280 + $0x24] sm:$0xf] %v2162
      %2291 = vst [vmem:[%s280 + $0x28] sm:$0xf] %v2163
      %2292 = vst [vmem:[%s280 + $0x2c] sm:$0xf] %v2164
      %2293 = vst [vmem:[%s280 + $0x30] sm:$0xf] %v2165
      %2294 = vst [vmem:[%s280 + $0x34] sm:$0xf] %v2166
      %2295 = vst [vmem:[%s280 + $0x38] sm:$0xf] %v2167
      %2296 = vst [vmem:[%s280 + $0x3c] sm:$0xf] %v2168
      %2297 = vst [vmem:[%s280 + $0x40] sm:$0xf] %v2169
      %2298 = vst [vmem:[%s280 + $0x44] sm:$0xf] %v2170
      %2299 = vst [vmem:[%s280 + $0x48] sm:$0xf] %v2171
      %2300 = vst [vmem:[%s280 + $0x4c] sm:$0xf] %v2172
      %2301 = vst [vmem:[%s280 + $0x50] sm:$0xf] %v2173
      %2302 = vst [vmem:[%s280 + $0x54] sm:$0xf] %v2174
      %2303 = vst [vmem:[%s280 + $0x58] sm:$0xf] %v2175
      %2304 = vst [vmem:[%s280 + $0x5c] sm:$0xf] %v2176
      %2305 = vst [vmem:[%s280 + $0x60] sm:$0xf] %v2177
      %2306 = vst [vmem:[%s280 + $0x64] sm:$0xf] %v2178
      %2307 = vst [vmem:[%s280 + $0x68] sm:$0xf] %v2179
      %2308 = vst [vmem:[%s280 + $0x6c] sm:$0xf] %v2180
      %2309 = vst [vmem:[%s280 + $0x70] sm:$0xf] %v2181
      %2310 = vst [vmem:[%s280 + $0x74] sm:$0xf] %v2182
      %2311 = vst [vmem:[%s280 + $0x78] sm:$0xf] %v2183
      %2312 = vst [vmem:[%s280 + $0x7c] sm:$0xf] %v2184
      %2313 = vst [vmem:[%s280 + $0x80] sm:$0xf] %v2185
      %2314 = vst [vmem:[%s280 + $0x84] sm:$0xf] %v2186
      %2315 = vst [vmem:[%s280 + $0x88] sm:$0xf] %v2187
      %2316 = vst [vmem:[%s280 + $0x8c] sm:$0xf] %v2188
      %2317 = vst [vmem:[%s280 + $0x90] sm:$0xf] %v2189
      %2318 = vst [vmem:[%s280 + $0x94] sm:$0xf] %v2190
      %2319 = vst [vmem:[%s280 + $0x98] sm:$0xf] %v2191
      %2320 = vst [vmem:[%s280 + $0x9c] sm:$0xf] %v2192
      %2321 = vst [vmem:[%s280 + $0xa0] sm:$0xf] %v2193
      %2322 = vst [vmem:[%s280 + $0xa4] sm:$0xf] %v2194
      %2323 = vst [vmem:[%s280 + $0xa8] sm:$0xf] %v2195
      %2324 = vst [vmem:[%s280 + $0xac] sm:$0xf] %v2196
      %2325 = vst [vmem:[%s280 + $0xb0] sm:$0xf] %v2197
      %2326 = vst [vmem:[%s280 + $0xb4] sm:$0xf] %v2198
      %2327 = vst [vmem:[%s280 + $0xb8] sm:$0xf] %v2199
      %2328 = vst [vmem:[%s280 + $0xbc] sm:$0xf] %v2200
      %2329 = vst [vmem:[%s280 + $0xc0] sm:$0xf] %v2201
      %2330 = vst [vmem:[%s280 + $0xc4] sm:$0xf] %v2202
      %2331 = vst [vmem:[%s280 + $0xc8] sm:$0xf] %v2203
      %2332 = vst [vmem:[%s280 + $0xcc] sm:$0xf] %v2204
      %2333 = vst [vmem:[%s280 + $0xd0] sm:$0xf] %v2205
      %2334 = vst [vmem:[%s280 + $0xd4] sm:$0xf] %v2206
      %2335 = vst [vmem:[%s280 + $0xd8] sm:$0xf] %v2207
      %2336 = vst [vmem:[%s280 + $0xdc] sm:$0xf] %v2208
      %2337 = vst [vmem:[%s280 + $0xe0] sm:$0xf] %v2209
      %2338 = vst [vmem:[%s280 + $0xe4] sm:$0xf] %v2210
      %2339 = vst [vmem:[%s280 + $0xe8] sm:$0xf] %v2211
      %2340 = vst [vmem:[%s280 + $0xec] sm:$0xf] %v2212
      %2341 = vst [vmem:[%s280 + $0xf0] sm:$0xf] %v2213
      %2342 = vst [vmem:[%s280 + $0xf4] sm:$0xf] %v2214
      %2343 = vst [vmem:[%s280 + $0xf8] sm:$0xf] %v2215
      %2344 = vst [vmem:[%s280 + $0xfc] sm:$0xf] %v2216
      %s2345 = smul.u32 64, %s18
      %p2346 = scmp.lt.s32.totalorder %s2345, 127
      %s2347 = scalar_select %p2346, %s2345, 127
      %s2348 = smul.addr %s2347, 4
      %s2349 = scalar_lea.vmem %s7, %s2348
      // Predicated region
      $region49: #{gesture_net_forward.1} parent=47 // pred_check
        %p2350 = pneg %p188
      $region50: #{gesture_net_forward.1} parent=47 // pred_check_branch
        %2352 = sbr.rel (%p2350) target = $region52
      $region51: #{gesture_net_forward.1} parent=47 // pred_region
        %s2353 = smul.u32 64, %s18
      $region52: #{gesture_net_forward.1} parent=47 // pred_fallthru
        _
    $region48: #{gesture_net_forward.1} parent=5 // pred_fallthru
      _
    %p2354 = scmp.le.s32.totalorder 2, %s13
    // Predicated region
    $region53: #{gesture_net_forward.1} parent=5 // pred_check
      %p2355 = pneg %p2354
    $region54: #{gesture_net_forward.1} parent=5 // pred_check_branch
      %2357 = sbr.rel (%p2355) target = $region56
    $region55: #{gesture_net_forward.1} parent=5 // pred_region
      %s2358 = ssub.s32 %s13, 2
      // Predicated region
      $region57: #{gesture_net_forward.1} parent=55 // pred_check
        %p2359 = pneg %p194
      $region58: #{gesture_net_forward.1} parent=55 // pred_check_branch
        %2361 = sbr.rel (%p2359) target = $region60
      $region59: #{gesture_net_forward.1} parent=55 // pred_region
        %s2362 = smul.u32 64, %s19
        %p2363 = scmp.lt.s32.totalorder %s2362, 127
        %s2364 = scalar_select %p2363, %s2362, 127
        %s2365 = smul.addr %s2364, 4
        %s2366 = scalar_lea.vmem %s7, %s2365
      $region60: #{gesture_net_forward.1} parent=55 // pred_fallthru
        _
    $region56: #{gesture_net_forward.1} parent=5 // pred_fallthru
      _
  $region6: #{gesture_net_forward.1} parent=0 // loop_footer
    %s17 = sadd.s32 1, %s13
  $region7: #{gesture_net_forward.1} parent=0 // loop_footer_branch
    %12 = sbr.rel target = $region3
  $region8: #{gesture_net_forward.1} parent=0 // loop_exit
    _

</llo_original>
